<compile_context>
chip_gen: v7x
topology: tpu7x:2x2x1
jax: 0.10.0
libtpu: 0.0.40
codegen_flags: <defaults>
</compile_context>

<pallas_src>
import math
from functools import partial

import jax
import jax.numpy as jnp
from jax.experimental import pallas as pl
from jax.experimental.pallas import tpu as pltpu


# ----------------------------------------------------------------------------
# Fused kernel (one grid step = one batch element).
# ----------------------------------------------------------------------------
def _fused_decoder_kernel(Cout, Cmid, N, W2, PAD,
                          x1_ref, x2_ref, pm_ref, cm_ref,
                          wt_ref, bt_ref, wc_ref, bc_ref,
                          o_ref, cat_ref, acc_ref):
    # x1_ref : (1, Cin, N)  bf16   nearest-neighbour 2x-upsampled x1, flat spatial
    # x2_ref : (1, C2,  N)  bf16   skip branch, flat spatial
    # pm_ref : (4, 1, N)    f32    output-parity masks (tap k = 2*dh + dw)
    # cm_ref : (2, 1, N)    f32    left/right column masks for kx = 0 / 2
    # wt_ref : (4*Cout,Cin) bf16   stacked ConvTranspose2d taps
    # wc_ref : (9,Cout,Cmid)bf16   3x3 conv taps (k = 3*ky + kx)
    # o_ref  : (1, Cout, N) f32
    # cat_ref: (Cmid, S)    bf16   concat([up, x2]) flat + zero aprons
    # acc_ref: (Cout, N)    f32    accumulator
    S = cat_ref.shape[1]

    # Zero the vertical-padding aprons every step (tiny; keeps the kernel free
    # of cross-step state so the batch axis can be sharded "parallel").
    cat_ref[:, 0:PAD] = jnp.zeros((Cmid, PAD), cat_ref.dtype)
    cat_ref[:, PAD + N:S] = jnp.zeros((Cmid, S - PAD - N), cat_ref.dtype)

    # ---- Stage 1: ConvTranspose2d(k=2, s=2) --------------------------------
    # One stacked matmul for all 4 (dh, dw) taps, then a parity-mask select.
    x1 = x1_ref[0]                                                   # (Cin, N)
    taps = jnp.dot(wt_ref[...], x1,
                   preferred_element_type=jnp.float32)               # (4*Cout, N)
    up = pm_ref[0] * taps[0 * Cout:1 * Cout]
    up = up + pm_ref[1] * taps[1 * Cout:2 * Cout]
    up = up + pm_ref[2] * taps[2 * Cout:3 * Cout]
    up = up + pm_ref[3] * taps[3 * Cout:4 * Cout]
    up = up + bt_ref[...]                     # bias hoisted out of the tap loop

    # ---- Stage 2: concat([up, x2], channel) into the flat VMEM scratch -----
    cat_ref[0:Cout, PAD:PAD + N] = up.astype(cat_ref.dtype)
    cat_ref[Cout:Cmid, PAD:PAD + N] = x2_ref[0]

    # ---- Stage 3: 3x3 conv / padding=1: 9 K=Cmid matmuls on offset slabs ---
    for ky in range(3):
        part = None
        for kx in range(3):
            off = PAD + (ky - 1) * W2 + (kx - 1)
            t = jnp.dot(wc_ref[3 * ky + kx], cat_ref[:, off:off + N],
                        preferred_element_type=jnp.float32)          # (Cout, N)
            if kx == 0:
                t = cm_ref[0] * t   # column -1 reads are padding -> zero them
            elif kx == 2:
                t = cm_ref[1] * t   # column W2 reads are padding -> zero them
            part = t if part is None else part + t
        if ky == 0:
            acc_ref[...] = part
        else:
            acc_ref[...] = acc_ref[...] + part

    # ---- Stage 4: bias + ReLU, lane-dense store ----------------------------
    o_ref[0] = jnp.maximum(acc_ref[...] + bc_ref[...], 0.0)


def _vmem_limit(in_blocks, out_blocks, scratch_bytes):
    est = scratch_bytes
    for shape, dt in in_blocks + out_blocks:
        est += 2 * math.prod(shape) * jnp.dtype(dt).itemsize   # double-buffered
    est = int(1.5 * est) + (4 << 20)                           # compiler slack
    return max(8 << 20, min(est, 48 << 20))


# ----------------------------------------------------------------------------
# Wrapper: NCHW in / NCHW out.  All wrapper-side ops are cheap (no full-size
# transposes or pads of the up branch).
# ----------------------------------------------------------------------------
def decoder_forward(x1_nchw, x2_nchw, params):
    wt, bt, wc, bc = params["wt"], params["bt"], params["wc"], params["bc"]
    B, Cin, H, W = x1_nchw.shape
    _, C2, H2, W2 = x2_nchw.shape
    Cout = wt.shape[1]
    Cmid = wc.shape[1]
    assert (H2, W2) == (2 * H, 2 * W)
    assert Cmid == Cout + C2

    N = H2 * W2
    PAD = W2 + 1                  # apron standing in for the +/-1 row of zero pad
    S = N + 2 * PAD
    cdt = jnp.bfloat16

    # Nearest-neighbour 2x upsample of x1 so the transposed conv becomes a
    # parity-masked 1x1 conv at full resolution (keeps every matmul lane-dense).
    # TODO(synk): fold this 2x expansion into the kernel to cut x1's HBM traffic 4x.
    x1nn = jnp.repeat(jnp.repeat(x1_nchw, 2, axis=2), 2, axis=3)
    x1nn = x1nn.reshape(B, Cin, N).astype(cdt)
    x2f = x2_nchw.reshape(B, C2, N).astype(cdt)       # reshape is free (metadata)

    # ConvTranspose2d weight (Cin, Cout, 2, 2) -> stacked (4*Cout, Cin), k=2*dh+dw.
    wt_stack = jnp.transpose(wt, (2, 3, 1, 0)).reshape(4 * Cout, Cin).astype(cdt)
    bt_r = bt.reshape(Cout, 1).astype(jnp.float32)
    # Conv2d weight (Cout, Cmid, 3, 3) -> (9, Cout, Cmid), k=3*ky+kx.
    wc_k = jnp.transpose(wc, (2, 3, 0, 1)).reshape(9, Cout, Cmid).astype(cdt)
    bc_r = bc.reshape(Cout, 1).astype(jnp.float32)

    # Tiny lane-axis masks (computed once).
    jj = jnp.arange(N, dtype=jnp.int32)
    ypar = (jj // W2) % 2
    xpar = (jj % W2) % 2
    pmask = jnp.stack([(ypar == dh) & (xpar == dw)
                       for dh in (0, 1) for dw in (0, 1)])
    pmask = pmask.astype(jnp.float32).reshape(4, 1, N)
    col = jj % W2
    cmask = jnp.stack([col != 0, col != W2 - 1]).astype(jnp.float32).reshape(2, 1, N)

    in_blocks = [
        ((1, Cin, N), cdt), ((1, C2, N), cdt),
        ((4, 1, N), jnp.float32), ((2, 1, N), jnp.float32),
        ((4 * Cout, Cin), cdt), ((Cout, 1), jnp.float32),
        ((9, Cout, Cmid), cdt), ((Cout, 1), jnp.float32),
    ]
    out_blocks = [((1, Cout, N), jnp.float32)]
    scratch_bytes = Cmid * S * 2 + Cout * N * 4

    # TODO(synk): for production-size feature maps, add a row-band grid axis
    # (with a 1-row halo) so blocks fit v7x's 64 MiB VMEM and both TensorCores
    # get work even at B=1.
    out_flat = pl.pallas_call(
        partial(_fused_decoder_kernel, Cout, Cmid, N, W2, PAD),
        out_shape=jax.ShapeDtypeStruct((B, Cout, N), jnp.float32),
        grid=(B,),
        in_specs=[
            pl.BlockSpec((1, Cin, N), lambda b: (b, 0, 0)),
            pl.BlockSpec((1, C2, N), lambda b: (b, 0, 0)),
            pl.BlockSpec((4, 1, N), lambda b: (0, 0, 0)),
            pl.BlockSpec((2, 1, N), lambda b: (0, 0, 0)),
            pl.BlockSpec((4 * Cout, Cin), lambda b: (0, 0)),
            pl.BlockSpec((Cout, 1), lambda b: (0, 0)),
            pl.BlockSpec((9, Cout, Cmid), lambda b: (0, 0, 0)),
            pl.BlockSpec((Cout, 1), lambda b: (0, 0)),
        ],
        out_specs=pl.BlockSpec((1, Cout, N), lambda b: (b, 0, 0)),
        scratch_shapes=[
            pltpu.VMEM((Cmid, S), cdt),          # concat([up, x2]) + zero aprons
            pltpu.VMEM((Cout, N), jnp.float32),  # f32 accumulator
        ],
        compiler_params=pltpu.CompilerParams(
            dimension_semantics=("parallel",),
            vmem_limit_bytes=_vmem_limit(in_blocks, out_blocks, scratch_bytes),
        ),
    )(x1nn, x2f, pmask, cmask, wt_stack, bt_r, wc_k, bc_r)

    # Free reshape back to NCHW (spatial was stored flat & lane-dense).
    return out_flat.reshape(B, Cout, H2, W2)


# ----------------------------------------------------------------------------
# Pure-JAX f32 reference (direct translation of the PyTorch forward).
# ----------------------------------------------------------------------------
def decoder_reference(x1, x2, params):
    wt, bt, wc, bc = params["wt"], params["bt"], params["wc"], params["bc"]
    B, Cin, H, W = x1.shape
    Cout = wt.shape[1]
    # ConvTranspose2d(k=2, s=2): out[b,o,2h+d,2w+k] = sum_c x1[b,c,h,w] * wt[c,o,d,k]
    u = jnp.einsum("bchw,codk->bohdwk", x1, wt).reshape(B, Cout, 2 * H, 2 * W)
    u = u + bt[None, :, None, None]
    cat = jnp.concatenate([u, x2], axis=1)
    catp = jnp.pad(cat, ((0, 0), (0, 0), (1, 1), (1, 1)))
    out = jnp.zeros((B, Cout, 2 * H, 2 * W), jnp.float32) + bc[None, :, None, None]
    for ky in range(3):
        for kx in range(3):
            out = out + jnp.einsum(
                "bmhw,om->bohw",
                catp[:, :, ky:ky + 2 * H, kx:kx + 2 * W],
                wc[:, :, ky, kx],
            )
    return jnp.maximum(out, 0.0)


if __name__ == "__main__":
    key = jax.random.PRNGKey(0)
    B, Cin, Cout, C2 = 2, 8, 4, 4
    H = W = 8
    Cmid = Cout + C2  # middle_channels = out_channels (up) + skip channels

    k1, k2, k3, k4, k5, k6 = jax.random.split(key, 6)
    x1 = jax.random.normal(k1, (B, Cin, H, W), jnp.float32)
    x2 = jax.random.normal(k2, (B, C2, 2 * H, 2 * W), jnp.float32)

    # Deterministic synthetic parameters (shapes per nn.ConvTranspose2d / nn.Conv2d).
    params = {
        "wt": 0.1 * jax.random.normal(k3, (Cin, Cout, 2, 2), jnp.float32),
        "bt": 0.1 * jax.random.normal(k4, (Cout,), jnp.float32),
        "wc": 0.1 * jax.random.normal(k5, (Cout, Cmid, 3, 3), jnp.float32),
        "bc": 0.1 * jax.random.normal(k6, (Cout,), jnp.float32),
    }

    fwd = jax.jit(decoder_forward)
    out = jax.block_until_ready(fwd(x1, x2, params))

    ref = decoder_reference(x1, x2, params)
    assert out.shape == (B, Cout, 2 * H, 2 * W), out.shape
    max_err = float(jnp.max(jnp.abs(out - ref)))
    # bf16 activations/weights with f32 accumulation -> loosened tolerance.
    assert jnp.allclose(out, ref, atol=3e-2, rtol=3e-2), max_err
    print("KERNEL_OK")
</pallas_src>

<mosaic_0001>
module attributes {stable_mosaic.version = 11 : i64} {
  func.func @_fused_decoder_kernel(%arg0: i32, %arg1: memref<1x8x256xbf16, #tpu.memory_space<vmem>>, %arg2: memref<1x4x256xbf16, #tpu.memory_space<vmem>>, %arg3: memref<4x1x256xf32, #tpu.memory_space<vmem>>, %arg4: memref<2x1x256xf32, #tpu.memory_space<vmem>>, %arg5: memref<16x8xbf16, #tpu.memory_space<vmem>>, %arg6: memref<4x1xf32, #tpu.memory_space<vmem>>, %arg7: memref<9x4x8xbf16, #tpu.memory_space<vmem>>, %arg8: memref<4x1xf32, #tpu.memory_space<vmem>>, %arg9: memref<1x4x256xf32, #tpu.memory_space<vmem>>, %arg10: memref<8x290xbf16, #tpu.memory_space<vmem>>, %arg11: memref<4x256xf32, #tpu.memory_space<vmem>>) attributes {dimension_semantics = [#tpu.dimension_semantics<parallel>], iteration_bounds = array<i64: 2>, scalar_prefetch = 0 : i64, scratch_operands = 2 : i64, tpu.core_type = #tpu.core_type<tc>, window_params = [{transform_indices = @transform_0, window_bounds = array<i64: 1, 8, 256>}, {transform_indices = @transform_1, window_bounds = array<i64: 1, 4, 256>}, {pipeline_mode = #tpu.pipeline_mode<synchronous>, transform_indices = @transform_2, window_bounds = array<i64: 4, 1, 256>}, {pipeline_mode = #tpu.pipeline_mode<synchronous>, transform_indices = @transform_3, window_bounds = array<i64: 2, 1, 256>}, {pipeline_mode = #tpu.pipeline_mode<synchronous>, transform_indices = @transform_4, window_bounds = array<i64: 16, 8>}, {pipeline_mode = #tpu.pipeline_mode<synchronous>, transform_indices = @transform_5, window_bounds = array<i64: 4, 1>}, {pipeline_mode = #tpu.pipeline_mode<synchronous>, transform_indices = @transform_6, window_bounds = array<i64: 9, 4, 8>}, {pipeline_mode = #tpu.pipeline_mode<synchronous>, transform_indices = @transform_7, window_bounds = array<i64: 4, 1>}, {transform_indices = @transform_8, window_bounds = array<i64: 1, 4, 256>}]} {
    %cst = arith.constant 0.000000e+00 : bf16
    %0 = vector.broadcast %cst : bf16 to vector<8x17xbf16>
    %c0 = arith.constant 0 : index
    %c0_0 = arith.constant 0 : index
    %1 = vector.load %arg10[%c0, %c0_0] : memref<8x290xbf16, #tpu.memory_space<vmem>>, vector<8x17xbf16>
    tpu.vector_store %arg10[%c0, %c0_0], %0 {strides = array<i32>} : memref<8x290xbf16, #tpu.memory_space<vmem>>, vector<8x17xbf16>,
    %cst_1 = arith.constant 0.000000e+00 : bf16
    %2 = vector.broadcast %cst_1 : bf16 to vector<8x17xbf16>
    %c0_2 = arith.constant 0 : index
    %c273 = arith.constant 273 : index
    %3 = vector.load %arg10[%c0_2, %c273] : memref<8x290xbf16, #tpu.memory_space<vmem>>, vector<8x17xbf16>
    tpu.vector_store %arg10[%c0_2, %c273], %2 {strides = array<i32>} : memref<8x290xbf16, #tpu.memory_space<vmem>>, vector<8x17xbf16>,
    %c0_3 = arith.constant 0 : index
    %c0_4 = arith.constant 0 : index
    %c0_5 = arith.constant 0 : index
    %4 = vector.load %arg1[%c0_3, %c0_4, %c0_5] : memref<1x8x256xbf16, #tpu.memory_space<vmem>>, vector<1x8x256xbf16>
    %5 = vector.shape_cast %4 : vector<1x8x256xbf16> to vector<8x256xbf16>
    %c0_6 = arith.constant 0 : index
    %c0_7 = arith.constant 0 : index
    %6 = vector.load %arg5[%c0_6, %c0_7] : memref<16x8xbf16, #tpu.memory_space<vmem>>, vector<16x8xbf16>
    %cst_8 = arith.constant dense<0.000000e+00> : vector<16x256xf32>
    %7 = tpu.matmul %6, %5, %cst_8 {dimension_numbers = #tpu.dot_dimension_numbers<[1], [0], [0], [1], [0, 0, 1, 1], [], []>} : vector<16x8xbf16>, vector<8x256xbf16>, vector<16x256xf32> -> vector<16x256xf32>
    %c0_9 = arith.constant 0 : index
    %c0_10 = arith.constant 0 : index
    %c0_11 = arith.constant 0 : index
    %8 = vector.load %arg3[%c0_9, %c0_10, %c0_11] : memref<4x1x256xf32, #tpu.memory_space<vmem>>, vector<1x1x256xf32>
    %9 = vector.shape_cast %8 : vector<1x1x256xf32> to vector<1x256xf32>
    %10 = vector.extract_strided_slice %7 {offsets = [0, 0], sizes = [4, 256], strides = [1, 1]} : vector<16x256xf32> to vector<4x256xf32>
    %11 = vector.broadcast %9 : vector<1x256xf32> to vector<4x256xf32>
    %12 = arith.mulf %11, %10 : vector<4x256xf32>
    %c1 = arith.constant 1 : index
    %c0_12 = arith.constant 0 : index
    %c0_13 = arith.constant 0 : index
    %13 = vector.load %arg3[%c1, %c0_12, %c0_13] : memref<4x1x256xf32, #tpu.memory_space<vmem>>, vector<1x1x256xf32>
    %14 = vector.shape_cast %13 : vector<1x1x256xf32> to vector<1x256xf32>
    %15 = vector.extract_strided_slice %7 {offsets = [4, 0], sizes = [4, 256], strides = [1, 1]} : vector<16x256xf32> to vector<4x256xf32>
    %16 = vector.broadcast %14 : vector<1x256xf32> to vector<4x256xf32>
    %17 = arith.mulf %16, %15 : vector<4x256xf32>
    %18 = arith.addf %12, %17 : vector<4x256xf32>
    %c2 = arith.constant 2 : index
    %c0_14 = arith.constant 0 : index
    %c0_15 = arith.constant 0 : index
    %19 = vector.load %arg3[%c2, %c0_14, %c0_15] : memref<4x1x256xf32, #tpu.memory_space<vmem>>, vector<1x1x256xf32>
    %20 = vector.shape_cast %19 : vector<1x1x256xf32> to vector<1x256xf32>
    %21 = vector.extract_strided_slice %7 {offsets = [8, 0], sizes = [4, 256], strides = [1, 1]} : vector<16x256xf32> to vector<4x256xf32>
    %22 = vector.broadcast %20 : vector<1x256xf32> to vector<4x256xf32>
    %23 = arith.mulf %22, %21 : vector<4x256xf32>
    %24 = arith.addf %18, %23 : vector<4x256xf32>
    %c3 = arith.constant 3 : index
    %c0_16 = arith.constant 0 : index
    %c0_17 = arith.constant 0 : index
    %25 = vector.load %arg3[%c3, %c0_16, %c0_17] : memref<4x1x256xf32, #tpu.memory_space<vmem>>, vector<1x1x256xf32>
    %26 = vector.shape_cast %25 : vector<1x1x256xf32> to vector<1x256xf32>
    %27 = vector.extract_strided_slice %7 {offsets = [12, 0], sizes = [4, 256], strides = [1, 1]} : vector<16x256xf32> to vector<4x256xf32>
    %28 = vector.broadcast %26 : vector<1x256xf32> to vector<4x256xf32>
    %29 = arith.mulf %28, %27 : vector<4x256xf32>
    %30 = arith.addf %24, %29 : vector<4x256xf32>
    %c0_18 = arith.constant 0 : index
    %c0_19 = arith.constant 0 : index
    %31 = vector.load %arg6[%c0_18, %c0_19] : memref<4x1xf32, #tpu.memory_space<vmem>>, vector<4x1xf32>
    %32 = vector.broadcast %31 : vector<4x1xf32> to vector<4x256xf32>
    %33 = arith.addf %30, %32 : vector<4x256xf32>
    %34 = arith.truncf %33 : vector<4x256xf32> to vector<4x256xbf16>
    %c0_20 = arith.constant 0 : index
    %c17 = arith.constant 17 : index
    %35 = vector.load %arg10[%c0_20, %c17] : memref<8x290xbf16, #tpu.memory_space<vmem>>, vector<4x256xbf16>
    tpu.vector_store %arg10[%c0_20, %c17], %34 {strides = array<i32>} : memref<8x290xbf16, #tpu.memory_space<vmem>>, vector<4x256xbf16>,
    %c0_21 = arith.constant 0 : index
    %c0_22 = arith.constant 0 : index
    %c0_23 = arith.constant 0 : index
    %36 = vector.load %arg2[%c0_21, %c0_22, %c0_23] : memref<1x4x256xbf16, #tpu.memory_space<vmem>>, vector<1x4x256xbf16>
    %37 = vector.shape_cast %36 : vector<1x4x256xbf16> to vector<4x256xbf16>
    %c4 = arith.constant 4 : index
    %c17_24 = arith.constant 17 : index
    %38 = vector.load %arg10[%c4, %c17_24] : memref<8x290xbf16, #tpu.memory_space<vmem>>, vector<4x256xbf16>
    tpu.vector_store %arg10[%c4, %c17_24], %37 {strides = array<i32>} : memref<8x290xbf16, #tpu.memory_space<vmem>>, vector<4x256xbf16>,
    %c0_25 = arith.constant 0 : index
    %c0_26 = arith.constant 0 : index
    %c0_27 = arith.constant 0 : index
    %39 = vector.load %arg7[%c0_25, %c0_26, %c0_27] : memref<9x4x8xbf16, #tpu.memory_space<vmem>>, vector<1x4x8xbf16>
    %40 = vector.shape_cast %39 : vector<1x4x8xbf16> to vector<4x8xbf16>
    %c0_28 = arith.constant 0 : index
    %c0_29 = arith.constant 0 : index
    %41 = vector.load %arg10[%c0_28, %c0_29] : memref<8x290xbf16, #tpu.memory_space<vmem>>, vector<8x256xbf16>
    %cst_30 = arith.constant dense<0.000000e+00> : vector<4x256xf32>
    %42 = tpu.matmul %40, %41, %cst_30 {dimension_numbers = #tpu.dot_dimension_numbers<[1], [0], [0], [1], [0, 0, 1, 1], [], []>} : vector<4x8xbf16>, vector<8x256xbf16>, vector<4x256xf32> -> vector<4x256xf32>
    %c0_31 = arith.constant 0 : index
    %c0_32 = arith.constant 0 : index
    %c0_33 = arith.constant 0 : index
    %43 = vector.load %arg4[%c0_31, %c0_32, %c0_33] : memref<2x1x256xf32, #tpu.memory_space<vmem>>, vector<1x1x256xf32>
    %44 = vector.shape_cast %43 : vector<1x1x256xf32> to vector<1x256xf32>
    %45 = vector.broadcast %44 : vector<1x256xf32> to vector<4x256xf32>
    %46 = arith.mulf %45, %42 : vector<4x256xf32>
    %c1_34 = arith.constant 1 : index
    %c0_35 = arith.constant 0 : index
    %c0_36 = arith.constant 0 : index
    %47 = vector.load %arg7[%c1_34, %c0_35, %c0_36] : memref<9x4x8xbf16, #tpu.memory_space<vmem>>, vector<1x4x8xbf16>
    %48 = vector.shape_cast %47 : vector<1x4x8xbf16> to vector<4x8xbf16>
    %c0_37 = arith.constant 0 : index
    %c1_38 = arith.constant 1 : index
    %49 = vector.load %arg10[%c0_37, %c1_38] : memref<8x290xbf16, #tpu.memory_space<vmem>>, vector<8x256xbf16>
    %cst_39 = arith.constant dense<0.000000e+00> : vector<4x256xf32>
    %50 = tpu.matmul %48, %49, %cst_39 {dimension_numbers = #tpu.dot_dimension_numbers<[1], [0], [0], [1], [0, 0, 1, 1], [], []>} : vector<4x8xbf16>, vector<8x256xbf16>, vector<4x256xf32> -> vector<4x256xf32>
    %51 = arith.addf %46, %50 : vector<4x256xf32>
    %c2_40 = arith.constant 2 : index
    %c0_41 = arith.constant 0 : index
    %c0_42 = arith.constant 0 : index
    %52 = vector.load %arg7[%c2_40, %c0_41, %c0_42] : memref<9x4x8xbf16, #tpu.memory_space<vmem>>, vector<1x4x8xbf16>
    %53 = vector.shape_cast %52 : vector<1x4x8xbf16> to vector<4x8xbf16>
    %c0_43 = arith.constant 0 : index
    %c2_44 = arith.constant 2 : index
    %54 = vector.load %arg10[%c0_43, %c2_44] : memref<8x290xbf16, #tpu.memory_space<vmem>>, vector<8x256xbf16>
    %cst_45 = arith.constant dense<0.000000e+00> : vector<4x256xf32>
    %55 = tpu.matmul %53, %54, %cst_45 {dimension_numbers = #tpu.dot_dimension_numbers<[1], [0], [0], [1], [0, 0, 1, 1], [], []>} : vector<4x8xbf16>, vector<8x256xbf16>, vector<4x256xf32> -> vector<4x256xf32>
    %c1_46 = arith.constant 1 : index
    %c0_47 = arith.constant 0 : index
    %c0_48 = arith.constant 0 : index
    %56 = vector.load %arg4[%c1_46, %c0_47, %c0_48] : memref<2x1x256xf32, #tpu.memory_space<vmem>>, vector<1x1x256xf32>
    %57 = vector.shape_cast %56 : vector<1x1x256xf32> to vector<1x256xf32>
    %58 = vector.broadcast %57 : vector<1x256xf32> to vector<4x256xf32>
    %59 = arith.mulf %58, %55 : vector<4x256xf32>
    %60 = arith.addf %51, %59 : vector<4x256xf32>
    %c0_49 = arith.constant 0 : index
    %c0_50 = arith.constant 0 : index
    %61 = vector.load %arg11[%c0_49, %c0_50] : memref<4x256xf32, #tpu.memory_space<vmem>>, vector<4x256xf32>
    tpu.vector_store %arg11[%c0_49, %c0_50], %60 {strides = array<i32>} : memref<4x256xf32, #tpu.memory_space<vmem>>, vector<4x256xf32>,
    %c3_51 = arith.constant 3 : index
    %c0_52 = arith.constant 0 : index
    %c0_53 = arith.constant 0 : index
    %62 = vector.load %arg7[%c3_51, %c0_52, %c0_53] : memref<9x4x8xbf16, #tpu.memory_space<vmem>>, vector<1x4x8xbf16>
    %63 = vector.shape_cast %62 : vector<1x4x8xbf16> to vector<4x8xbf16>
    %c0_54 = arith.constant 0 : index
    %c16 = arith.constant 16 : index
    %64 = vector.load %arg10[%c0_54, %c16] : memref<8x290xbf16, #tpu.memory_space<vmem>>, vector<8x256xbf16>
    %cst_55 = arith.constant dense<0.000000e+00> : vector<4x256xf32>
    %65 = tpu.matmul %63, %64, %cst_55 {dimension_numbers = #tpu.dot_dimension_numbers<[1], [0], [0], [1], [0, 0, 1, 1], [], []>} : vector<4x8xbf16>, vector<8x256xbf16>, vector<4x256xf32> -> vector<4x256xf32>
    %c0_56 = arith.constant 0 : index
    %c0_57 = arith.constant 0 : index
    %c0_58 = arith.constant 0 : index
    %66 = vector.load %arg4[%c0_56, %c0_57, %c0_58] : memref<2x1x256xf32, #tpu.memory_space<vmem>>, vector<1x1x256xf32>
    %67 = vector.shape_cast %66 : vector<1x1x256xf32> to vector<1x256xf32>
    %68 = vector.broadcast %67 : vector<1x256xf32> to vector<4x256xf32>
    %69 = arith.mulf %68, %65 : vector<4x256xf32>
    %c4_59 = arith.constant 4 : index
    %c0_60 = arith.constant 0 : index
    %c0_61 = arith.constant 0 : index
    %70 = vector.load %arg7[%c4_59, %c0_60, %c0_61] : memref<9x4x8xbf16, #tpu.memory_space<vmem>>, vector<1x4x8xbf16>
    %71 = vector.shape_cast %70 : vector<1x4x8xbf16> to vector<4x8xbf16>
    %c0_62 = arith.constant 0 : index
    %c17_63 = arith.constant 17 : index
    %72 = vector.load %arg10[%c0_62, %c17_63] : memref<8x290xbf16, #tpu.memory_space<vmem>>, vector<8x256xbf16>
    %cst_64 = arith.constant dense<0.000000e+00> : vector<4x256xf32>
    %73 = tpu.matmul %71, %72, %cst_64 {dimension_numbers = #tpu.dot_dimension_numbers<[1], [0], [0], [1], [0, 0, 1, 1], [], []>} : vector<4x8xbf16>, vector<8x256xbf16>, vector<4x256xf32> -> vector<4x256xf32>
    %74 = arith.addf %69, %73 : vector<4x256xf32>
    %c5 = arith.constant 5 : index
    %c0_65 = arith.constant 0 : index
    %c0_66 = arith.constant 0 : index
    %75 = vector.load %arg7[%c5, %c0_65, %c0_66] : memref<9x4x8xbf16, #tpu.memory_space<vmem>>, vector<1x4x8xbf16>
    %76 = vector.shape_cast %75 : vector<1x4x8xbf16> to vector<4x8xbf16>
    %c0_67 = arith.constant 0 : index
    %c18 = arith.constant 18 : index
    %77 = vector.load %arg10[%c0_67, %c18] : memref<8x290xbf16, #tpu.memory_space<vmem>>, vector<8x256xbf16>
    %cst_68 = arith.constant dense<0.000000e+00> : vector<4x256xf32>
    %78 = tpu.matmul %76, %77, %cst_68 {dimension_numbers = #tpu.dot_dimension_numbers<[1], [0], [0], [1], [0, 0, 1, 1], [], []>} : vector<4x8xbf16>, vector<8x256xbf16>, vector<4x256xf32> -> vector<4x256xf32>
    %c1_69 = arith.constant 1 : index
    %c0_70 = arith.constant 0 : index
    %c0_71 = arith.constant 0 : index
    %79 = vector.load %arg4[%c1_69, %c0_70, %c0_71] : memref<2x1x256xf32, #tpu.memory_space<vmem>>, vector<1x1x256xf32>
    %80 = vector.shape_cast %79 : vector<1x1x256xf32> to vector<1x256xf32>
    %81 = vector.broadcast %80 : vector<1x256xf32> to vector<4x256xf32>
    %82 = arith.mulf %81, %78 : vector<4x256xf32>
    %83 = arith.addf %74, %82 : vector<4x256xf32>
    %c0_72 = arith.constant 0 : index
    %c0_73 = arith.constant 0 : index
    %84 = vector.load %arg11[%c0_72, %c0_73] : memref<4x256xf32, #tpu.memory_space<vmem>>, vector<4x256xf32>
    %85 = arith.addf %84, %83 : vector<4x256xf32>
    %c0_74 = arith.constant 0 : index
    %c0_75 = arith.constant 0 : index
    %86 = vector.load %arg11[%c0_74, %c0_75] : memref<4x256xf32, #tpu.memory_space<vmem>>, vector<4x256xf32>
    tpu.vector_store %arg11[%c0_74, %c0_75], %85 {strides = array<i32>} : memref<4x256xf32, #tpu.memory_space<vmem>>, vector<4x256xf32>,
    %c6 = arith.constant 6 : index
    %c0_76 = arith.constant 0 : index
    %c0_77 = arith.constant 0 : index
    %87 = vector.load %arg7[%c6, %c0_76, %c0_77] : memref<9x4x8xbf16, #tpu.memory_space<vmem>>, vector<1x4x8xbf16>
    %88 = vector.shape_cast %87 : vector<1x4x8xbf16> to vector<4x8xbf16>
    %c0_78 = arith.constant 0 : index
    %c32 = arith.constant 32 : index
    %89 = vector.load %arg10[%c0_78, %c32] : memref<8x290xbf16, #tpu.memory_space<vmem>>, vector<8x256xbf16>
    %cst_79 = arith.constant dense<0.000000e+00> : vector<4x256xf32>
    %90 = tpu.matmul %88, %89, %cst_79 {dimension_numbers = #tpu.dot_dimension_numbers<[1], [0], [0], [1], [0, 0, 1, 1], [], []>} : vector<4x8xbf16>, vector<8x256xbf16>, vector<4x256xf32> -> vector<4x256xf32>
    %c0_80 = arith.constant 0 : index
    %c0_81 = arith.constant 0 : index
    %c0_82 = arith.constant 0 : index
    %91 = vector.load %arg4[%c0_80, %c0_81, %c0_82] : memref<2x1x256xf32, #tpu.memory_space<vmem>>, vector<1x1x256xf32>
    %92 = vector.shape_cast %91 : vector<1x1x256xf32> to vector<1x256xf32>
    %93 = vector.broadcast %92 : vector<1x256xf32> to vector<4x256xf32>
    %94 = arith.mulf %93, %90 : vector<4x256xf32>
    %c7 = arith.constant 7 : index
    %c0_83 = arith.constant 0 : index
    %c0_84 = arith.constant 0 : index
    %95 = vector.load %arg7[%c7, %c0_83, %c0_84] : memref<9x4x8xbf16, #tpu.memory_space<vmem>>, vector<1x4x8xbf16>
    %96 = vector.shape_cast %95 : vector<1x4x8xbf16> to vector<4x8xbf16>
    %c0_85 = arith.constant 0 : index
    %c33 = arith.constant 33 : index
    %97 = vector.load %arg10[%c0_85, %c33] : memref<8x290xbf16, #tpu.memory_space<vmem>>, vector<8x256xbf16>
    %cst_86 = arith.constant dense<0.000000e+00> : vector<4x256xf32>
    %98 = tpu.matmul %96, %97, %cst_86 {dimension_numbers = #tpu.dot_dimension_numbers<[1], [0], [0], [1], [0, 0, 1, 1], [], []>} : vector<4x8xbf16>, vector<8x256xbf16>, vector<4x256xf32> -> vector<4x256xf32>
    %99 = arith.addf %94, %98 : vector<4x256xf32>
    %c8 = arith.constant 8 : index
    %c0_87 = arith.constant 0 : index
    %c0_88 = arith.constant 0 : index
    %100 = vector.load %arg7[%c8, %c0_87, %c0_88] : memref<9x4x8xbf16, #tpu.memory_space<vmem>>, vector<1x4x8xbf16>
    %101 = vector.shape_cast %100 : vector<1x4x8xbf16> to vector<4x8xbf16>
    %c0_89 = arith.constant 0 : index
    %c34 = arith.constant 34 : index
    %102 = vector.load %arg10[%c0_89, %c34] : memref<8x290xbf16, #tpu.memory_space<vmem>>, vector<8x256xbf16>
    %cst_90 = arith.constant dense<0.000000e+00> : vector<4x256xf32>
    %103 = tpu.matmul %101, %102, %cst_90 {dimension_numbers = #tpu.dot_dimension_numbers<[1], [0], [0], [1], [0, 0, 1, 1], [], []>} : vector<4x8xbf16>, vector<8x256xbf16>, vector<4x256xf32> -> vector<4x256xf32>
    %c1_91 = arith.constant 1 : index
    %c0_92 = arith.constant 0 : index
    %c0_93 = arith.constant 0 : index
    %104 = vector.load %arg4[%c1_91, %c0_92, %c0_93] : memref<2x1x256xf32, #tpu.memory_space<vmem>>, vector<1x1x256xf32>
    %105 = vector.shape_cast %104 : vector<1x1x256xf32> to vector<1x256xf32>
    %106 = vector.broadcast %105 : vector<1x256xf32> to vector<4x256xf32>
    %107 = arith.mulf %106, %103 : vector<4x256xf32>
    %108 = arith.addf %99, %107 : vector<4x256xf32>
    %c0_94 = arith.constant 0 : index
    %c0_95 = arith.constant 0 : index
    %109 = vector.load %arg11[%c0_94, %c0_95] : memref<4x256xf32, #tpu.memory_space<vmem>>, vector<4x256xf32>
    %110 = arith.addf %109, %108 : vector<4x256xf32>
    %c0_96 = arith.constant 0 : index
    %c0_97 = arith.constant 0 : index
    %111 = vector.load %arg11[%c0_96, %c0_97] : memref<4x256xf32, #tpu.memory_space<vmem>>, vector<4x256xf32>
    tpu.vector_store %arg11[%c0_96, %c0_97], %110 {strides = array<i32>} : memref<4x256xf32, #tpu.memory_space<vmem>>, vector<4x256xf32>,
    %c0_98 = arith.constant 0 : index
    %c0_99 = arith.constant 0 : index
    %112 = vector.load %arg11[%c0_98, %c0_99] : memref<4x256xf32, #tpu.memory_space<vmem>>, vector<4x256xf32>
    %c0_100 = arith.constant 0 : index
    %c0_101 = arith.constant 0 : index
    %113 = vector.load %arg8[%c0_100, %c0_101] : memref<4x1xf32, #tpu.memory_space<vmem>>, vector<4x1xf32>
    %114 = vector.broadcast %113 : vector<4x1xf32> to vector<4x256xf32>
    %115 = arith.addf %112, %114 : vector<4x256xf32>
    %cst_102 = arith.constant 0.000000e+00 : f32
    %116 = vector.broadcast %cst_102 : f32 to vector<4x256xf32>
    %117 = arith.maximumf %115, %116 : vector<4x256xf32>
    %c0_103 = arith.constant 0 : index
    %c0_104 = arith.constant 0 : index
    %c0_105 = arith.constant 0 : index
    %118 = vector.load %arg9[%c0_103, %c0_104, %c0_105] : memref<1x4x256xf32, #tpu.memory_space<vmem>>, vector<1x4x256xf32>
    %119 = vector.shape_cast %118 : vector<1x4x256xf32> to vector<4x256xf32>
    %120 = vector.shape_cast %117 : vector<4x256xf32> to vector<1x4x256xf32>
    tpu.vector_store %arg9[%c0_103, %c0_104, %c0_105], %120 {strides = array<i32>} : memref<1x4x256xf32, #tpu.memory_space<vmem>>, vector<1x4x256xf32>,
    return
  }
  func.func @transform_0(%arg0: i32) -> (i32, i32, i32) {
    %c0_i32 = arith.constant 0 : i32
    %c0_i32_0 = arith.constant 0 : i32
    %c0_i32_1 = arith.constant 0 : i32
    return %arg0, %c0_i32, %c0_i32_0 : i32, i32, i32
  }
  func.func @transform_1(%arg0: i32) -> (i32, i32, i32) {
    %c0_i32 = arith.constant 0 : i32
    %c0_i32_0 = arith.constant 0 : i32
    %c0_i32_1 = arith.constant 0 : i32
    return %arg0, %c0_i32, %c0_i32_0 : i32, i32, i32
  }
  func.func @transform_2(%arg0: i32) -> (i32, i32, i32) {
    %c0_i32 = arith.constant 0 : i32
    %c0_i32_0 = arith.constant 0 : i32
    %c0_i32_1 = arith.constant 0 : i32
    %c0_i32_2 = arith.constant 0 : i32
    return %c0_i32, %c0_i32_0, %c0_i32_1 : i32, i32, i32
  }
  func.func @transform_3(%arg0: i32) -> (i32, i32, i32) {
    %c0_i32 = arith.constant 0 : i32
    %c0_i32_0 = arith.constant 0 : i32
    %c0_i32_1 = arith.constant 0 : i32
    %c0_i32_2 = arith.constant 0 : i32
    return %c0_i32, %c0_i32_0, %c0_i32_1 : i32, i32, i32
  }
  func.func @transform_4(%arg0: i32) -> (i32, i32) {
    %c0_i32 = arith.constant 0 : i32
    %c0_i32_0 = arith.constant 0 : i32
    %c0_i32_1 = arith.constant 0 : i32
    return %c0_i32, %c0_i32_0 : i32, i32
  }
  func.func @transform_5(%arg0: i32) -> (i32, i32) {
    %c0_i32 = arith.constant 0 : i32
    %c0_i32_0 = arith.constant 0 : i32
    %c0_i32_1 = arith.constant 0 : i32
    return %c0_i32, %c0_i32_0 : i32, i32
  }
  func.func @transform_6(%arg0: i32) -> (i32, i32, i32) {
    %c0_i32 = arith.constant 0 : i32
    %c0_i32_0 = arith.constant 0 : i32
    %c0_i32_1 = arith.constant 0 : i32
    %c0_i32_2 = arith.constant 0 : i32
    return %c0_i32, %c0_i32_0, %c0_i32_1 : i32, i32, i32
  }
  func.func @transform_7(%arg0: i32) -> (i32, i32) {
    %c0_i32 = arith.constant 0 : i32
    %c0_i32_0 = arith.constant 0 : i32
    %c0_i32_1 = arith.constant 0 : i32
    return %c0_i32, %c0_i32_0 : i32, i32
  }
  func.func @transform_8(%arg0: i32) -> (i32, i32, i32) {
    %c0_i32 = arith.constant 0 : i32
    %c0_i32_0 = arith.constant 0 : i32
    %c0_i32_1 = arith.constant 0 : i32
    return %arg0, %c0_i32, %c0_i32_0 : i32, i32, i32
  }
}

</mosaic_0001>

<llo_original>
// kernel: decoder_forward.1
$region0: #{decoder_forward.1}
  #allocation0 [shape = 'u32[]', space=smem, size = 0x4, offset = 0x4, fixed_abs, tag = 'smem constant byte address 0x4 - core index']
  #allocation1 [shape = 'u32[144,128]{1,0:T(1,128)}', space=vmem, size = 0x12000, scoped, tag = 'internal scratch']
  #allocation2 [shape = 'bf16[8,290]{1,0:T(8,128)(2,1)}', space=vmem, size = 0x1800, scoped, tag = 'scratch operand']
  #allocation3 [shape = 'f32[4,256]{1,0:T(4,128)}', space=vmem, size = 0x1000, scoped, tag = 'scratch operand']
  %s0 = inlined_call_operand.vmem [shape: bf16[2,8,256], index: 0, kind: input, shape index: {}]
  %s1 = inlined_call_operand.vmem [shape: bf16[2,4,256], index: 1, kind: input, shape index: {}]
  %s2 = inlined_call_operand.vmem [shape: f32[4,1,256], index: 2, kind: input, shape index: {}]
  %s3 = inlined_call_operand.vmem [shape: f32[2,1,256], index: 3, kind: input, shape index: {}]
  %s4 = inlined_call_operand.vmem [shape: bf16[16,8], index: 4, kind: input, shape index: {}]
  %s5 = inlined_call_operand.vmem [shape: f32[4,1], index: 5, kind: input, shape index: {}]
  %s6 = inlined_call_operand.vmem [shape: bf16[9,4,8], index: 6, kind: input, shape index: {}]
  %s7 = inlined_call_operand.vmem [shape: f32[4,1], index: 7, kind: input, shape index: {}]
  %s8 = inlined_call_operand.vmem [shape: f32[2,4,256], index: 8, kind: output, shape index: {}]
  %s9 = sld [smem:[#allocation0]]
  $region65: #{decoder_forward.1} parent=0
    _
  %s11 = ssub.s32 1, %s9
  %s12 = scalar_select 0, %s11, %s9
  loop: start=0, step=1, limit=4
  $region2: #{decoder_forward.1} parent=0 // loop_pre_header
    _
  $region3: #{decoder_forward.1} parent=0 // loop_header
    %s14 = sphi 0, %s18
    %p15 = scmp.ge.s32.totalorder %s14, 4
    %s24 = sphi 0, %s26
    %s27 = sphi 0, %s24
    %s28 = sphi 0, %s27
    %s44 = sphi 0, %s28
    %s50 = sphi 0, %s52
    %s53 = sphi 0, %s50
    %s54 = sphi 0, %s53
    %s70 = sphi 0, %s54
    %s74 = sphi 0, %s74
    %s76 = sphi 0, %s74
    %s77 = sphi 0, %s76
    %s91 = sphi 0, %s77
    %s95 = sphi 0, %s95
    %s97 = sphi 0, %s95
    %s98 = sphi 0, %s97
    %s112 = sphi 0, %s98
    %s116 = sphi 0, %s116
    %s118 = sphi 0, %s116
    %s119 = sphi 0, %s118
    %s133 = sphi 0, %s119
    %s137 = sphi 0, %s137
    %s139 = sphi 0, %s137
    %s140 = sphi 0, %s139
    %s154 = sphi 0, %s140
    %s158 = sphi 0, %s158
    %s160 = sphi 0, %s158
    %s161 = sphi 0, %s160
    %s175 = sphi 0, %s161
    %s179 = sphi 0, %s179
    %s181 = sphi 0, %s179
    %s182 = sphi 0, %s181
    %s196 = sphi 0, %s182
    %s202 = sphi 0, %s204
    %s205 = sphi 0, %s202
    %s206 = sphi 0, %s205
    %s222 = sphi 0, %s206
  $region4: #{decoder_forward.1} parent=0 // loop_header_branch
    %17 = sbr.rel (%p15) target = $region8
  $region5: #{decoder_forward.1} parent=0 // loop_body
    %s19 = ssub.s32 %s14, 1
    %s20 = ssub.s32 %s14, 2
    %s21 = sadd.s32 %s14, 1
    %s22 = ssub.s32 %s14, %s21
    %p23 = scmp.eq.s32.totalorder %s22, 0
    %s25 = sadd.s32 %s24, 1
    %s26 = scalar_select %p23, %s24, %s25
    %p29 = pneg %p23
    %p30 = scmp.eq.s32.totalorder %s14, 1
    %p31 = por %p29, %p30
    %p32 = scmp.ne.s32.totalorder %s24, %s27
    %p33 = scmp.eq.s32.totalorder %s14, 0
    %p34 = por %p32, %p33
    %p35 = scmp.ne.s32.totalorder %s24, %s27
    %p36 = scmp.eq.s32.totalorder %s19, 1
    %p37 = por %p35, %p36
    %p38 = scmp.ne.s32.totalorder %s27, %s28
    %p39 = scmp.eq.s32.totalorder %s19, 0
    %p40 = por %p38, %p39
    %p41 = scmp.ne.s32.totalorder %s27, %s28
    %p42 = scmp.eq.s32.totalorder %s20, 1
    %p43 = por %p41, %p42
    %p45 = scmp.ne.s32.totalorder %s28, %s44
    %p46 = scmp.eq.s32.totalorder %s20, 0
    %p47 = por %p45, %p46
    %s48 = ssub.s32 %s14, %s21
    %p49 = scmp.eq.s32.totalorder %s48, 0
    %s51 = sadd.s32 %s50, 1
    %s52 = scalar_select %p49, %s50, %s51
    %p55 = pneg %p49
    %p56 = scmp.eq.s32.totalorder %s14, 1
    %p57 = por %p55, %p56
    %p58 = scmp.ne.s32.totalorder %s50, %s53
    %p59 = scmp.eq.s32.totalorder %s14, 0
    %p60 = por %p58, %p59
    %p61 = scmp.ne.s32.totalorder %s50, %s53
    %p62 = scmp.eq.s32.totalorder %s19, 1
    %p63 = por %p61, %p62
    %p64 = scmp.ne.s32.totalorder %s53, %s54
    %p65 = scmp.eq.s32.totalorder %s19, 0
    %p66 = por %p64, %p65
    %p67 = scmp.ne.s32.totalorder %s53, %s54
    %p68 = scmp.eq.s32.totalorder %s20, 1
    %p69 = por %p67, %p68
    %p71 = scmp.ne.s32.totalorder %s54, %s70
    %p72 = scmp.eq.s32.totalorder %s20, 0
    %p73 = por %p71, %p72
    %s75 = sadd.s32 %s74, 1
    %p78 = scmp.eq.s32.totalorder %s14, 1
    %p79 = scmp.ne.s32.totalorder %s74, %s76
    %p80 = scmp.eq.s32.totalorder %s14, 0
    %p81 = por %p79, %p80
    %p82 = scmp.ne.s32.totalorder %s74, %s76
    %p83 = scmp.eq.s32.totalorder %s19, 1
    %p84 = por %p82, %p83
    %p85 = scmp.ne.s32.totalorder %s76, %s77
    %p86 = scmp.eq.s32.totalorder %s19, 0
    %p87 = por %p85, %p86
    %p88 = scmp.ne.s32.totalorder %s76, %s77
    %p89 = scmp.eq.s32.totalorder %s20, 1
    %p90 = por %p88, %p89
    %p92 = scmp.ne.s32.totalorder %s77, %s91
    %p93 = scmp.eq.s32.totalorder %s20, 0
    %p94 = por %p92, %p93
    %s96 = sadd.s32 %s95, 1
    %p99 = scmp.eq.s32.totalorder %s14, 1
    %p100 = scmp.ne.s32.totalorder %s95, %s97
    %p101 = scmp.eq.s32.totalorder %s14, 0
    %p102 = por %p100, %p101
    %p103 = scmp.ne.s32.totalorder %s95, %s97
    %p104 = scmp.eq.s32.totalorder %s19, 1
    %p105 = por %p103, %p104
    %p106 = scmp.ne.s32.totalorder %s97, %s98
    %p107 = scmp.eq.s32.totalorder %s19, 0
    %p108 = por %p106, %p107
    %p109 = scmp.ne.s32.totalorder %s97, %s98
    %p110 = scmp.eq.s32.totalorder %s20, 1
    %p111 = por %p109, %p110
    %p113 = scmp.ne.s32.totalorder %s98, %s112
    %p114 = scmp.eq.s32.totalorder %s20, 0
    %p115 = por %p113, %p114
    %s117 = sadd.s32 %s116, 1
    %p120 = scmp.eq.s32.totalorder %s14, 1
    %p121 = scmp.ne.s32.totalorder %s116, %s118
    %p122 = scmp.eq.s32.totalorder %s14, 0
    %p123 = por %p121, %p122
    %p124 = scmp.ne.s32.totalorder %s116, %s118
    %p125 = scmp.eq.s32.totalorder %s19, 1
    %p126 = por %p124, %p125
    %p127 = scmp.ne.s32.totalorder %s118, %s119
    %p128 = scmp.eq.s32.totalorder %s19, 0
    %p129 = por %p127, %p128
    %p130 = scmp.ne.s32.totalorder %s118, %s119
    %p131 = scmp.eq.s32.totalorder %s20, 1
    %p132 = por %p130, %p131
    %p134 = scmp.ne.s32.totalorder %s119, %s133
    %p135 = scmp.eq.s32.totalorder %s20, 0
    %p136 = por %p134, %p135
    %s138 = sadd.s32 %s137, 1
    %p141 = scmp.eq.s32.totalorder %s14, 1
    %p142 = scmp.ne.s32.totalorder %s137, %s139
    %p143 = scmp.eq.s32.totalorder %s14, 0
    %p144 = por %p142, %p143
    %p145 = scmp.ne.s32.totalorder %s137, %s139
    %p146 = scmp.eq.s32.totalorder %s19, 1
    %p147 = por %p145, %p146
    %p148 = scmp.ne.s32.totalorder %s139, %s140
    %p149 = scmp.eq.s32.totalorder %s19, 0
    %p150 = por %p148, %p149
    %p151 = scmp.ne.s32.totalorder %s139, %s140
    %p152 = scmp.eq.s32.totalorder %s20, 1
    %p153 = por %p151, %p152
    %p155 = scmp.ne.s32.totalorder %s140, %s154
    %p156 = scmp.eq.s32.totalorder %s20, 0
    %p157 = por %p155, %p156
    %s159 = sadd.s32 %s158, 1
    %p162 = scmp.eq.s32.totalorder %s14, 1
    %p163 = scmp.ne.s32.totalorder %s158, %s160
    %p164 = scmp.eq.s32.totalorder %s14, 0
    %p165 = por %p163, %p164
    %p166 = scmp.ne.s32.totalorder %s158, %s160
    %p167 = scmp.eq.s32.totalorder %s19, 1
    %p168 = por %p166, %p167
    %p169 = scmp.ne.s32.totalorder %s160, %s161
    %p170 = scmp.eq.s32.totalorder %s19, 0
    %p171 = por %p169, %p170
    %p172 = scmp.ne.s32.totalorder %s160, %s161
    %p173 = scmp.eq.s32.totalorder %s20, 1
    %p174 = por %p172, %p173
    %p176 = scmp.ne.s32.totalorder %s161, %s175
    %p177 = scmp.eq.s32.totalorder %s20, 0
    %p178 = por %p176, %p177
    %s180 = sadd.s32 %s179, 1
    %p183 = scmp.eq.s32.totalorder %s14, 1
    %p184 = scmp.ne.s32.totalorder %s179, %s181
    %p185 = scmp.eq.s32.totalorder %s14, 0
    %p186 = por %p184, %p185
    %p187 = scmp.ne.s32.totalorder %s179, %s181
    %p188 = scmp.eq.s32.totalorder %s19, 1
    %p189 = por %p187, %p188
    %p190 = scmp.ne.s32.totalorder %s181, %s182
    %p191 = scmp.eq.s32.totalorder %s19, 0
    %p192 = por %p190, %p191
    %p193 = scmp.ne.s32.totalorder %s181, %s182
    %p194 = scmp.eq.s32.totalorder %s20, 1
    %p195 = por %p193, %p194
    %p197 = scmp.ne.s32.totalorder %s182, %s196
    %p198 = scmp.eq.s32.totalorder %s20, 0
    %p199 = por %p197, %p198
    %s200 = ssub.s32 %s14, %s21
    %p201 = scmp.eq.s32.totalorder %s200, 0
    %s203 = sadd.s32 %s202, 1
    %s204 = scalar_select %p201, %s202, %s203
    %p207 = pneg %p201
    %p208 = scmp.eq.s32.totalorder %s14, 1
    %p209 = por %p207, %p208
    %p210 = scmp.ne.s32.totalorder %s202, %s205
    %p211 = scmp.eq.s32.totalorder %s14, 0
    %p212 = por %p210, %p211
    %p213 = scmp.ne.s32.totalorder %s202, %s205
    %p214 = scmp.eq.s32.totalorder %s19, 1
    %p215 = por %p213, %p214
    %p216 = scmp.ne.s32.totalorder %s205, %s206
    %p217 = scmp.eq.s32.totalorder %s19, 0
    %p218 = por %p216, %p217
    %p219 = scmp.ne.s32.totalorder %s205, %s206
    %p220 = scmp.eq.s32.totalorder %s20, 1
    %p221 = por %p219, %p220
    %p223 = scmp.ne.s32.totalorder %s206, %s222
    %p224 = scmp.eq.s32.totalorder %s20, 0
    %p225 = por %p223, %p224
    %p226 = scmp.le.s32.totalorder 1, %s14
    %p227 = scmp.lt.s32.totalorder %s14, 3
    %p228 = pnand %p226, %p227
    %p229 = pneg %p228
    // Predicated region
    $region9: #{decoder_forward.1} parent=5 // pred_check
      _
    $region10: #{decoder_forward.1} parent=5 // pred_check_branch
      %231 = sbr.rel (%p228) target = $region12
    $region11: #{decoder_forward.1} parent=5 // pred_region
      %s232 = ssub.s32 %s14, 1
      // Predicated region
      $region13: #{decoder_forward.1} parent=11 // pred_check
        %p233 = pneg %p87
      $region14: #{decoder_forward.1} parent=11 // pred_check_branch
        %235 = sbr.rel (%p233) target = $region16
      $region15: #{decoder_forward.1} parent=11 // pred_region
        _
      $region16: #{decoder_forward.1} parent=11 // pred_fallthru
        _
      // Predicated region
      $region17: #{decoder_forward.1} parent=11 // pred_check
        %p236 = pneg %p108
      $region18: #{decoder_forward.1} parent=11 // pred_check_branch
        %238 = sbr.rel (%p236) target = $region20
      $region19: #{decoder_forward.1} parent=11 // pred_region
        _
      $region20: #{decoder_forward.1} parent=11 // pred_fallthru
        _
      // Predicated region
      $region21: #{decoder_forward.1} parent=11 // pred_check
        %p239 = pneg %p129
      $region22: #{decoder_forward.1} parent=11 // pred_check_branch
        %241 = sbr.rel (%p239) target = $region24
      $region23: #{decoder_forward.1} parent=11 // pred_region
        _
      $region24: #{decoder_forward.1} parent=11 // pred_fallthru
        _
      // Predicated region
      $region25: #{decoder_forward.1} parent=11 // pred_check
        %p242 = pneg %p150
      $region26: #{decoder_forward.1} parent=11 // pred_check_branch
        %244 = sbr.rel (%p242) target = $region28
      $region27: #{decoder_forward.1} parent=11 // pred_region
        _
      $region28: #{decoder_forward.1} parent=11 // pred_fallthru
        _
      // Predicated region
      $region29: #{decoder_forward.1} parent=11 // pred_check
        %p245 = pneg %p171
      $region30: #{decoder_forward.1} parent=11 // pred_check_branch
        %247 = sbr.rel (%p245) target = $region32
      $region31: #{decoder_forward.1} parent=11 // pred_region
        _
      $region32: #{decoder_forward.1} parent=11 // pred_fallthru
        _
      // Predicated region
      $region33: #{decoder_forward.1} parent=11 // pred_check
        %p248 = pneg %p192
      $region34: #{decoder_forward.1} parent=11 // pred_check_branch
        %250 = sbr.rel (%p248) target = $region36
      $region35: #{decoder_forward.1} parent=11 // pred_region
        _
      $region36: #{decoder_forward.1} parent=11 // pred_fallthru
        _
    $region12: #{decoder_forward.1} parent=5 // pred_fallthru
      _
    %p251 = scmp.lt.s32.totalorder %s14, 2
    // Predicated region
    $region37: #{decoder_forward.1} parent=5 // pred_check
      %p252 = pneg %p251
    $region38: #{decoder_forward.1} parent=5 // pred_check_branch
      %254 = sbr.rel (%p252) target = $region40
    $region39: #{decoder_forward.1} parent=5 // pred_region
      // Predicated region
      $region41: #{decoder_forward.1} parent=39 // pred_check
        %p255 = pneg %p34
      $region42: #{decoder_forward.1} parent=39 // pred_check_branch
        %257 = sbr.rel (%p255) target = $region44
      $region43: #{decoder_forward.1} parent=39 // pred_region
        %p258 = scmp.lt.s32.totalorder %s14, 1
        %s259 = scalar_select %p258, %s14, 1
        %s260 = smul.addr %s259, 2
        %s261 = smul.addr %s260, 4
        %s262 = scalar_lea.vmem %s0, %s261
      $region44: #{decoder_forward.1} parent=39 // pred_fallthru
        _
      // Predicated region
      $region45: #{decoder_forward.1} parent=39 // pred_check
        %p263 = pneg %p60
      $region46: #{decoder_forward.1} parent=39 // pred_check_branch
        %265 = sbr.rel (%p263) target = $region48
      $region47: #{decoder_forward.1} parent=39 // pred_region
        %p266 = scmp.lt.s32.totalorder %s14, 1
        %s267 = scalar_select %p266, %s14, 1
        %s268 = smul.addr %s267, 2
        %s269 = smul.addr %s268, 2
        %s270 = scalar_lea.vmem %s1, %s269
      $region48: #{decoder_forward.1} parent=39 // pred_fallthru
        _
    $region40: #{decoder_forward.1} parent=5 // pred_fallthru
      _
    %p271 = scmp.le.s32.totalorder 1, %s14
    %p272 = scmp.lt.s32.totalorder %s14, 3
    %p273 = pnand %p271, %p272
    %p274 = pneg %p273
    // Predicated region
    $region49: #{decoder_forward.1} parent=5 // pred_check
      _
    $region50: #{decoder_forward.1} parent=5 // pred_check_branch
      %276 = sbr.rel (%p273) target = $region52
    $region51: #{decoder_forward.1} parent=5 // pred_region
      %s277 = ssub.s32 %s14, 1
      %p278 = scmp.lt.s32.totalorder %s19, 1
      %s279 = scalar_select %p278, %s19, 1
      %s280 = smul.addr %s279, 2
      %s281 = smul.addr %s280, 4
      %s282 = scalar_lea.vmem %s0, %s281
      %p283 = pneg %p40
      %p284 = pneg %p37
      %p285 = scmp.lt.s32.totalorder %s19, 1
      %s286 = scalar_select %p285, %s19, 1
      %s287 = smul.addr %s286, 2
      %s288 = smul.addr %s287, 2
      %s289 = scalar_lea.vmem %s1, %s288
      %p290 = pneg %p66
      %p291 = pneg %p63
      %p292 = pneg %p87
      %p293 = pneg %p84
      %p294 = pneg %p108
      %p295 = pneg %p105
      %p296 = pneg %p129
      %p297 = pneg %p126
      %p298 = pneg %p150
      %p299 = pneg %p147
      %p300 = pneg %p171
      %p301 = pneg %p168
      %p302 = pneg %p192
      %p303 = pneg %p189
      %p304 = pneg %p218
      %p305 = pneg %p215
      %p306 = scmp.lt.s32.totalorder %s19, 1
      %s307 = scalar_select %p306, %s19, 1
      %s308 = smul.addr %s307, 2
      %s309 = smul.addr %s308, 4
      %s310 = scalar_lea.vmem %s8, %s309
      %p311 = scmp.lt.s32.totalorder %s19, 1
      %s312 = scalar_select %p311, %s19, 1
      %s313 = smul.addr %s312, 2
      %s314 = smul.addr %s313, 4
      %s315 = scalar_lea.vmem %s0, %s314
      %p316 = scmp.lt.s32.totalorder %s19, 1
      %s317 = scalar_select %p316, %s19, 1
      %s318 = smul.addr %s317, 2
      %s319 = smul.addr %s318, 2
      %s320 = scalar_lea.vmem %s1, %s319
      %p321 = scmp.lt.s32.totalorder %s19, 1
      %s322 = scalar_select %p321, %s19, 1
      %s323 = smul.addr %s322, 2
      %s324 = smul.addr %s323, 4
      %s325 = scalar_lea.vmem %s8, %s324
      %vm327 = vcmask 134144
      %328 = vst.msk [vmem:[#allocation2] sm:$0xf] %vm327, 0
      %vm329 = vcmask 273544
      %330 = vst.msk [vmem:[#allocation2 + $0x8] sm:$0xf] %vm329, 0
      %v331 = vld [vmem:[%s315] sm:$0xff]
      %v332 = vld [vmem:[%s4] sm:$0xf]
      %v333 = vld [vmem:[%s4 + $0x4] sm:$0xf]
      %v336 = vunpack.c.l.b16 %v332
      %v337 = vunpack.c.l.b16 %v333
      %v338 = vpack.c.b16 %v337, %v336
      %v340 = vunpack.c.l.b16 %v331
      %v341 = vunpack.c.h.b16 %v331
      %v342 = vpack.c.b16 %v340, %v340
      %v343 = vpack.c.b16 %v341, %v341
      %vm344 = vcmask 64512
      %v346 = vsel %vm344, %v338, 0
      %vm348 = vcmask 1043456
      %v350 = vsel %vm348, %v342, 0
      %v353 = vsel %vm348, %v343, 0
      %355 = vmatprep.subr.bf16.mxu0 %v353
      %356 = vmatpush1.bf16.msra.mxu0 %v350
      %357 = vmatprep.subr.bf16.mxu0 0
      %358 = vmatpush1.bf16.msra.mxu0 0
      %359 = vmatprep.subr.bf16.mxu0 0
      %360 = vmatpush1.bf16.msra.mxu0 0
      %361 = vmatprep.subr.bf16.mxu0 0
      %362 = vmatpush1.bf16.msra.mxu0 0
      %363 = vmatprep.subr.bf16.mxu0 0
      %364 = vmatpush1.bf16.msra.mxu0 0
      %365 = vmatprep.subr.bf16.mxu0 0
      %366 = vmatpush1.bf16.msra.mxu0 0
      %367 = vmatprep.subr.bf16.mxu0 0
      %368 = vmatpush1.bf16.msra.mxu0 0
      %369 = vmatprep.subr.bf16.mxu0 0
      %370 = vmatpush1.bf16.msra.mxu0 0
      %371 = vmatprep.subr.bf16.mxu0 0
      %372 = vmatpush1.bf16.msra.mxu0 0
      %373 = vmatprep.subr.bf16.mxu0 0
      %374 = vmatpush1.bf16.msra.mxu0 0
      %375 = vmatprep.subr.bf16.mxu0 0
      %376 = vmatpush1.bf16.msra.mxu0 0
      %377 = vmatprep.subr.bf16.mxu0 0
      %378 = vmatpush1.bf16.msra.mxu0 0
      %379 = vmatprep.subr.bf16.mxu0 0
      %380 = vmatpush1.bf16.msra.mxu0 0
      %381 = vmatprep.subr.bf16.mxu0 0
      %382 = vmatpush1.bf16.msra.mxu0 0
      %383 = vmatprep.subr.bf16.mxu0 0
      %384 = vmatpush1.bf16.msra.mxu0 0
      %385 = vmatprep.subr.bf16.mxu0 0
      %386 = vmatpush1.bf16.msra.mxu0 0
      %387 = vmatprep.mubr.bf16.mxu0 0
      %388 = vmatmul.mubr.bf16.gmra.mrb[0].mxu0 %v346
      %v389 = vpop.f32.mrb[0].mxu0
      %v390 = vadd.f32 0.0, %v389
      %v391 = vpop.f32.mrb[0].mxu0
      %v392 = vadd.f32 0.0, %v391
      %v393 = vpop.f32.mrb[0].mxu0
      %v394 = vadd.f32 0.0, %v393
      %v395 = vpop.f32.mrb[0].mxu0
      %v396 = vadd.f32 0.0, %v395
      %397 = vdwg.mxu0
      %v398 = vld [vmem:[%s2] sm:$0x3]
      %v400 = vlaneseq
      %v401 = vshrl.u32 %v400, 7
      %v402 = vsub.s32 0, %v401
      %v403 = vrot.slane %v398, %v402
      %v404 = vlaneseq
      %v405 = vshrl.u32 %v404, 7
      %v406 = vsub.s32 1, %v405
      %v407 = vrot.slane %v398, %v406
      %v410 = vmul.f32 %v403, %v390
      %v411 = vmul.f32 %v407, %v392
      %s412 = scalar_lea.vmem %s2, 2
      %v413 = vld [vmem:[%s412] sm:$0x3]
      %v415 = vlaneseq
      %v416 = vshrl.u32 %v415, 7
      %v417 = vsub.s32 0, %v416
      %v418 = vrot.slane %v413, %v417
      %v419 = vlaneseq
      %v420 = vshrl.u32 %v419, 7
      %v421 = vsub.s32 1, %v420
      %v422 = vrot.slane %v413, %v421
      %v425 = vmul.f32 %v418, %v390
      %v426 = vmul.f32 %v422, %v392
      %v429 = vrot.slane %v425, 4
      %v430 = vrot.slane %v426, 4
      %v433 = vadd.f32 %v410, %v429
      %v434 = vadd.f32 %v411, %v430
      %s435 = scalar_lea.vmem %s2, 4
      %v436 = vld [vmem:[%s435] sm:$0x3]
      %v438 = vlaneseq
      %v439 = vshrl.u32 %v438, 7
      %v440 = vsub.s32 0, %v439
      %v441 = vrot.slane %v436, %v440
      %v442 = vlaneseq
      %v443 = vshrl.u32 %v442, 7
      %v444 = vsub.s32 1, %v443
      %v445 = vrot.slane %v436, %v444
      %v448 = vmul.f32 %v441, %v394
      %v449 = vmul.f32 %v445, %v396
      %v450 = vadd.f32 %v433, %v448
      %v451 = vadd.f32 %v434, %v449
      %s452 = scalar_lea.vmem %s2, 6
      %v453 = vld [vmem:[%s452] sm:$0x3]
      %v455 = vlaneseq
      %v456 = vshrl.u32 %v455, 7
      %v457 = vsub.s32 0, %v456
      %v458 = vrot.slane %v453, %v457
      %v459 = vlaneseq
      %v460 = vshrl.u32 %v459, 7
      %v461 = vsub.s32 1, %v460
      %v462 = vrot.slane %v453, %v461
      %v465 = vmul.f32 %v458, %v394
      %v466 = vmul.f32 %v462, %v396
      %v469 = vrot.slane %v465, 4
      %v470 = vrot.slane %v466, 4
      %v473 = vadd.f32 %v450, %v469
      %v474 = vadd.f32 %v451, %v470
      %v475 = vld [vmem:[%s5] sm:$0xf]
      %477 = vset.pattern.permute.xlu0 0
      %478 = vperm.xlu0 %477, %v475
      %v479 = vpop.permute.xlu0 %478
      %v481 = vadd.f32 %v473, %v479
      %v482 = vadd.f32 %v474, %v479
      %v483 = vpack.c.bf16 %v481, %v481
      %v484 = vpack.c.bf16 %v482, %v482
      %v487 = vunpack.c.l.b16 %v483
      %v488 = vunpack.c.l.b16 %v484
      %v489 = vpack.c.b16 %v488, %v487
      %490 = vrot.lane.b32.xlu0 %v489, 17
      %v491 = vpop.permute.xlu0 %490
      %v492 = vrot.slane %v491, 4
      %vm493 = vcmask 138240
      %v494 = vsel %vm493, %v492, %v491
      %vm497 = vcmask 1041544
      %vm498 = vcmask 1045508
      %vm499 = vmor %vm498, %vm497
      %500 = vst.msk [vmem:[#allocation2] sm:$0x33] %vm499, %v494
      %vm501 = vcmask 132096
      %502 = vst.msk [vmem:[#allocation2 + $0x8] sm:$0x3] %vm501, %v492
      %v503 = vld [vmem:[%s320] sm:$0xf]
      %v505 = vcombine.low %v503, %v503
      %v507 = vunpack.c.l.s4 1983009808
      %v508 = vunpack.c.0.s8 %v507
      %v509 = vlaneseq
      %v510 = vshrl.u32 %v509, 7
      %v511 = vsub.s32 %v508, %v510
      %v512 = vrot.slane %v505, %v511
      %513 = vrot.lane.b32.xlu0 %v512, 17
      %v514 = vpop.permute.xlu0 %513
      %v515 = vrot.slane %v514, 4
      %v516 = vsel %vm493, %v515, %v514
      %vm519 = vcmask 1043594
      %vm520 = vcmask 1047558
      %vm521 = vmor %vm520, %vm519
      %522 = vst.msk [vmem:[#allocation2] sm:$0xcc] %vm521, %v516
      %vm523 = vcmask 134146
      %524 = vst.msk [vmem:[#allocation2 + $0x8] sm:$0xc] %vm523, %v515
      %v525 = vld [vmem:[%s6] sm:$0x3]
      %v526 = vld [vmem:[#allocation2] sm:$0xff]
      %v528 = vunpack.c.l.b16 %v526
      %v529 = vunpack.c.h.b16 %v526
      %v530 = vpack.c.b16 %v528, %v528
      %v531 = vpack.c.b16 %v529, %v529
      %v533 = vsel %vm344, %v525, 0
      %v536 = vsel %vm348, %v530, 0
      %v539 = vsel %vm348, %v531, 0
      %541 = vmatprep.subr.bf16.mxu0 %v539
      %542 = vmatpush1.bf16.msra.mxu0 %v536
      %543 = vmatprep.subr.bf16.mxu0 0
      %544 = vmatpush1.bf16.msra.mxu0 0
      %545 = vmatprep.subr.bf16.mxu0 0
      %546 = vmatpush1.bf16.msra.mxu0 0
      %547 = vmatprep.subr.bf16.mxu0 0
      %548 = vmatpush1.bf16.msra.mxu0 0
      %549 = vmatprep.subr.bf16.mxu0 0
      %550 = vmatpush1.bf16.msra.mxu0 0
      %551 = vmatprep.subr.bf16.mxu0 0
      %552 = vmatpush1.bf16.msra.mxu0 0
      %553 = vmatprep.subr.bf16.mxu0 0
      %554 = vmatpush1.bf16.msra.mxu0 0
      %555 = vmatprep.subr.bf16.mxu0 0
      %556 = vmatpush1.bf16.msra.mxu0 0
      %557 = vmatprep.subr.bf16.mxu0 0
      %558 = vmatpush1.bf16.msra.mxu0 0
      %559 = vmatprep.subr.bf16.mxu0 0
      %560 = vmatpush1.bf16.msra.mxu0 0
      %561 = vmatprep.subr.bf16.mxu0 0
      %562 = vmatpush1.bf16.msra.mxu0 0
      %563 = vmatprep.subr.bf16.mxu0 0
      %564 = vmatpush1.bf16.msra.mxu0 0
      %565 = vmatprep.subr.bf16.mxu0 0
      %566 = vmatpush1.bf16.msra.mxu0 0
      %567 = vmatprep.subr.bf16.mxu0 0
      %568 = vmatpush1.bf16.msra.mxu0 0
      %569 = vmatprep.subr.bf16.mxu0 0
      %570 = vmatpush1.bf16.msra.mxu0 0
      %571 = vmatprep.subr.bf16.mxu0 0
      %572 = vmatpush1.bf16.msra.mxu0 0
      %573 = vmatprep.mubr.bf16.mxu0 0
      %574 = vmatmul.mubr.bf16.gmra.mrb[0].mxu0 %v533
      %v575 = vpop.f32.mrb[0].mxu0
      %v576 = vadd.f32 0.0, %v575
      %v577 = vpop.f32.mrb[0].mxu0
      %v578 = vadd.f32 0.0, %v577
      %v579 = vpop.f32.mrb[0].mxu0
      %v580 = vpop.f32.mrb[0].mxu0
      %581 = vdwg.mxu0
      %v582 = vld [vmem:[%s3] sm:$0x3]
      %v584 = vlaneseq
      %v585 = vshrl.u32 %v584, 7
      %v586 = vsub.s32 0, %v585
      %v587 = vrot.slane %v582, %v586
      %v588 = vlaneseq
      %v589 = vshrl.u32 %v588, 7
      %v590 = vsub.s32 1, %v589
      %v591 = vrot.slane %v582, %v590
      %v594 = vmul.f32 %v587, %v576
      %v595 = vmul.f32 %v591, %v578
      %s596 = scalar_lea.vmem %s6, 2
      %v597 = vld [vmem:[%s596] sm:$0x3]
      %v598 = vld [vmem:[#allocation2] sm:$0xff]
      %v599 = vld [vmem:[#allocation2 + $0x8] sm:$0xf]
      %v602 = vunpack.c.l.b16 %v598
      %v603 = vunpack.c.h.b16 %v598
      %v604 = vunpack.c.l.b16 %v599
      %v605 = vpack.c.b16 %v602, %v602
      %v606 = vpack.c.b16 %v603, %v603
      %v607 = vpack.c.b16 %v604, %v604
      %608 = vrot.lane.b32.xlu0 %v605, 127
      %v609 = vpop.permute.xlu0 %608
      %610 = vrot.lane.b32.xlu0 %v606, 127
      %v611 = vpop.permute.xlu0 %610
      %612 = vrot.lane.b32.xlu0 %v607, 127
      %v613 = vpop.permute.xlu0 %612
      %vm614 = vcmask 1039360
      %v615 = vsel %vm614, %v609, %v611
      %v616 = vsel %vm614, %v611, %v613
      %v618 = vsel %vm344, %v597, 0
      %v621 = vsel %vm348, %v615, 0
      %v624 = vsel %vm348, %v616, 0
      %626 = vmatprep.subr.bf16.mxu0 %v624
      %627 = vmatpush1.bf16.msra.mxu0 %v621
      %628 = vmatprep.subr.bf16.mxu0 0
      %629 = vmatpush1.bf16.msra.mxu0 0
      %630 = vmatprep.subr.bf16.mxu0 0
      %631 = vmatpush1.bf16.msra.mxu0 0
      %632 = vmatprep.subr.bf16.mxu0 0
      %633 = vmatpush1.bf16.msra.mxu0 0
      %634 = vmatprep.subr.bf16.mxu0 0
      %635 = vmatpush1.bf16.msra.mxu0 0
      %636 = vmatprep.subr.bf16.mxu0 0
      %637 = vmatpush1.bf16.msra.mxu0 0
      %638 = vmatprep.subr.bf16.mxu0 0
      %639 = vmatpush1.bf16.msra.mxu0 0
      %640 = vmatprep.subr.bf16.mxu0 0
      %641 = vmatpush1.bf16.msra.mxu0 0
      %642 = vmatprep.subr.bf16.mxu0 0
      %643 = vmatpush1.bf16.msra.mxu0 0
      %644 = vmatprep.subr.bf16.mxu0 0
      %645 = vmatpush1.bf16.msra.mxu0 0
      %646 = vmatprep.subr.bf16.mxu0 0
      %647 = vmatpush1.bf16.msra.mxu0 0
      %648 = vmatprep.subr.bf16.mxu0 0
      %649 = vmatpush1.bf16.msra.mxu0 0
      %650 = vmatprep.subr.bf16.mxu0 0
      %651 = vmatpush1.bf16.msra.mxu0 0
      %652 = vmatprep.subr.bf16.mxu0 0
      %653 = vmatpush1.bf16.msra.mxu0 0
      %654 = vmatprep.subr.bf16.mxu0 0
      %655 = vmatpush1.bf16.msra.mxu0 0
      %656 = vmatprep.subr.bf16.mxu0 0
      %657 = vmatpush1.bf16.msra.mxu0 0
      %658 = vmatprep.mubr.bf16.mxu0 0
      %659 = vmatmul.mubr.bf16.gmra.mrb[0].mxu0 %v618
      %v660 = vpop.f32.mrb[0].mxu0
      %v661 = vadd.f32 0.0, %v660
      %v662 = vpop.f32.mrb[0].mxu0
      %v663 = vadd.f32 0.0, %v662
      %v664 = vpop.f32.mrb[0].mxu0
      %v665 = vpop.f32.mrb[0].mxu0
      %666 = vdwg.mxu0
      %v667 = vadd.f32 %v594, %v661
      %v668 = vadd.f32 %v595, %v663
      %s669 = scalar_lea.vmem %s6, 4
      %v670 = vld [vmem:[%s669] sm:$0x3]
      %671 = vrot.lane.b32.xlu0 %v605, 126
      %v672 = vpop.permute.xlu0 %671
      %673 = vrot.lane.b32.xlu0 %v606, 126
      %v674 = vpop.permute.xlu0 %673
      %675 = vrot.lane.b32.xlu0 %v607, 126
      %v676 = vpop.permute.xlu0 %675
      %vm677 = vcmask 1031168
      %v678 = vsel %vm677, %v672, %v674
      %v679 = vsel %vm677, %v674, %v676
      %v681 = vsel %vm344, %v670, 0
      %v684 = vsel %vm348, %v678, 0
      %v687 = vsel %vm348, %v679, 0
      %689 = vmatprep.subr.bf16.mxu0 %v687
      %690 = vmatpush1.bf16.msra.mxu0 %v684
      %691 = vmatprep.subr.bf16.mxu0 0
      %692 = vmatpush1.bf16.msra.mxu0 0
      %693 = vmatprep.subr.bf16.mxu0 0
      %694 = vmatpush1.bf16.msra.mxu0 0
      %695 = vmatprep.subr.bf16.mxu0 0
      %696 = vmatpush1.bf16.msra.mxu0 0
      %697 = vmatprep.subr.bf16.mxu0 0
      %698 = vmatpush1.bf16.msra.mxu0 0
      %699 = vmatprep.subr.bf16.mxu0 0
      %700 = vmatpush1.bf16.msra.mxu0 0
      %701 = vmatprep.subr.bf16.mxu0 0
      %702 = vmatpush1.bf16.msra.mxu0 0
      %703 = vmatprep.subr.bf16.mxu0 0
      %704 = vmatpush1.bf16.msra.mxu0 0
      %705 = vmatprep.subr.bf16.mxu0 0
      %706 = vmatpush1.bf16.msra.mxu0 0
      %707 = vmatprep.subr.bf16.mxu0 0
      %708 = vmatpush1.bf16.msra.mxu0 0
      %709 = vmatprep.subr.bf16.mxu0 0
      %710 = vmatpush1.bf16.msra.mxu0 0
      %711 = vmatprep.subr.bf16.mxu0 0
      %712 = vmatpush1.bf16.msra.mxu0 0
      %713 = vmatprep.subr.bf16.mxu0 0
      %714 = vmatpush1.bf16.msra.mxu0 0
      %715 = vmatprep.subr.bf16.mxu0 0
      %716 = vmatpush1.bf16.msra.mxu0 0
      %717 = vmatprep.subr.bf16.mxu0 0
      %718 = vmatpush1.bf16.msra.mxu0 0
      %719 = vmatprep.subr.bf16.mxu0 0
      %720 = vmatpush1.bf16.msra.mxu0 0
      %721 = vmatprep.mubr.bf16.mxu0 0
      %722 = vmatmul.mubr.bf16.gmra.mrb[0].mxu0 %v681
      %v723 = vpop.f32.mrb[0].mxu0
      %v724 = vadd.f32 0.0, %v723
      %v725 = vpop.f32.mrb[0].mxu0
      %v726 = vadd.f32 0.0, %v725
      %v727 = vpop.f32.mrb[0].mxu0
      %v728 = vpop.f32.mrb[0].mxu0
      %729 = vdwg.mxu0
      %s730 = scalar_lea.vmem %s3, 2
      %v731 = vld [vmem:[%s730] sm:$0x3]
      %v733 = vlaneseq
      %v734 = vshrl.u32 %v733, 7
      %v735 = vsub.s32 0, %v734
      %v736 = vrot.slane %v731, %v735
      %v737 = vlaneseq
      %v738 = vshrl.u32 %v737, 7
      %v739 = vsub.s32 1, %v738
      %v740 = vrot.slane %v731, %v739
      %v743 = vmul.f32 %v736, %v724
      %v744 = vmul.f32 %v740, %v726
      %v745 = vadd.f32 %v667, %v743
      %v746 = vadd.f32 %v668, %v744
      %v749 = vcombine.low %v745, %v746
      %751 = vst [vmem:[#allocation3] sm:$0xff] %v749
      %s752 = scalar_lea.vmem %s6, 6
      %v753 = vld [vmem:[%s752] sm:$0x3]
      %v754 = vld [vmem:[#allocation2] sm:$0xff]
      %v755 = vld [vmem:[#allocation2 + $0x8] sm:$0xf]
      %v758 = vunpack.c.l.b16 %v754
      %v759 = vunpack.c.h.b16 %v754
      %v760 = vunpack.c.l.b16 %v755
      %v761 = vpack.c.b16 %v758, %v758
      %v762 = vpack.c.b16 %v759, %v759
      %v763 = vpack.c.b16 %v760, %v760
      %764 = vrot.lane.b32.xlu0 %v761, 112
      %v765 = vpop.permute.xlu0 %764
      %766 = vrot.lane.b32.xlu0 %v762, 112
      %v767 = vpop.permute.xlu0 %766
      %768 = vrot.lane.b32.xlu0 %v763, 112
      %v769 = vpop.permute.xlu0 %768
      %vm770 = vcmask 916480
      %v771 = vsel %vm770, %v765, %v767
      %v772 = vsel %vm770, %v767, %v769
      %v774 = vsel %vm344, %v753, 0
      %v777 = vsel %vm348, %v771, 0
      %v780 = vsel %vm348, %v772, 0
      %782 = vmatprep.subr.bf16.mxu0 %v780
      %783 = vmatpush1.bf16.msra.mxu0 %v777
      %784 = vmatprep.subr.bf16.mxu0 0
      %785 = vmatpush1.bf16.msra.mxu0 0
      %786 = vmatprep.subr.bf16.mxu0 0
      %787 = vmatpush1.bf16.msra.mxu0 0
      %788 = vmatprep.subr.bf16.mxu0 0
      %789 = vmatpush1.bf16.msra.mxu0 0
      %790 = vmatprep.subr.bf16.mxu0 0
      %791 = vmatpush1.bf16.msra.mxu0 0
      %792 = vmatprep.subr.bf16.mxu0 0
      %793 = vmatpush1.bf16.msra.mxu0 0
      %794 = vmatprep.subr.bf16.mxu0 0
      %795 = vmatpush1.bf16.msra.mxu0 0
      %796 = vmatprep.subr.bf16.mxu0 0
      %797 = vmatpush1.bf16.msra.mxu0 0
      %798 = vmatprep.subr.bf16.mxu0 0
      %799 = vmatpush1.bf16.msra.mxu0 0
      %800 = vmatprep.subr.bf16.mxu0 0
      %801 = vmatpush1.bf16.msra.mxu0 0
      %802 = vmatprep.subr.bf16.mxu0 0
      %803 = vmatpush1.bf16.msra.mxu0 0
      %804 = vmatprep.subr.bf16.mxu0 0
      %805 = vmatpush1.bf16.msra.mxu0 0
      %806 = vmatprep.subr.bf16.mxu0 0
      %807 = vmatpush1.bf16.msra.mxu0 0
      %808 = vmatprep.subr.bf16.mxu0 0
      %809 = vmatpush1.bf16.msra.mxu0 0
      %810 = vmatprep.subr.bf16.mxu0 0
      %811 = vmatpush1.bf16.msra.mxu0 0
      %812 = vmatprep.subr.bf16.mxu0 0
      %813 = vmatpush1.bf16.msra.mxu0 0
      %814 = vmatprep.mubr.bf16.mxu0 0
      %815 = vmatmul.mubr.bf16.gmra.mrb[0].mxu0 %v774
      %v816 = vpop.f32.mrb[0].mxu0
      %v817 = vadd.f32 0.0, %v816
      %v818 = vpop.f32.mrb[0].mxu0
      %v819 = vadd.f32 0.0, %v818
      %v820 = vpop.f32.mrb[0].mxu0
      %v821 = vpop.f32.mrb[0].mxu0
      %822 = vdwg.mxu0
      %v823 = vld [vmem:[%s3] sm:$0x3]
      %v825 = vlaneseq
      %v826 = vshrl.u32 %v825, 7
      %v827 = vsub.s32 0, %v826
      %v828 = vrot.slane %v823, %v827
      %v829 = vlaneseq
      %v830 = vshrl.u32 %v829, 7
      %v831 = vsub.s32 1, %v830
      %v832 = vrot.slane %v823, %v831
      %v835 = vmul.f32 %v828, %v817
      %v836 = vmul.f32 %v832, %v819
      %s837 = scalar_lea.vmem %s6, 8
      %v838 = vld [vmem:[%s837] sm:$0x3]
      %839 = vrot.lane.b32.xlu0 %v761, 111
      %v840 = vpop.permute.xlu0 %839
      %841 = vrot.lane.b32.xlu0 %v762, 111
      %v842 = vpop.permute.xlu0 %841
      %843 = vrot.lane.b32.xlu0 %v763, 111
      %v844 = vpop.permute.xlu0 %843
      %vm845 = vcmask 908288
      %v846 = vsel %vm845, %v840, %v842
      %v847 = vsel %vm845, %v842, %v844
      %v849 = vsel %vm344, %v838, 0
      %v852 = vsel %vm348, %v846, 0
      %v855 = vsel %vm348, %v847, 0
      %857 = vmatprep.subr.bf16.mxu0 %v855
      %858 = vmatpush1.bf16.msra.mxu0 %v852
      %859 = vmatprep.subr.bf16.mxu0 0
      %860 = vmatpush1.bf16.msra.mxu0 0
      %861 = vmatprep.subr.bf16.mxu0 0
      %862 = vmatpush1.bf16.msra.mxu0 0
      %863 = vmatprep.subr.bf16.mxu0 0
      %864 = vmatpush1.bf16.msra.mxu0 0
      %865 = vmatprep.subr.bf16.mxu0 0
      %866 = vmatpush1.bf16.msra.mxu0 0
      %867 = vmatprep.subr.bf16.mxu0 0
      %868 = vmatpush1.bf16.msra.mxu0 0
      %869 = vmatprep.subr.bf16.mxu0 0
      %870 = vmatpush1.bf16.msra.mxu0 0
      %871 = vmatprep.subr.bf16.mxu0 0
      %872 = vmatpush1.bf16.msra.mxu0 0
      %873 = vmatprep.subr.bf16.mxu0 0
      %874 = vmatpush1.bf16.msra.mxu0 0
      %875 = vmatprep.subr.bf16.mxu0 0
      %876 = vmatpush1.bf16.msra.mxu0 0
      %877 = vmatprep.subr.bf16.mxu0 0
      %878 = vmatpush1.bf16.msra.mxu0 0
      %879 = vmatprep.subr.bf16.mxu0 0
      %880 = vmatpush1.bf16.msra.mxu0 0
      %881 = vmatprep.subr.bf16.mxu0 0
      %882 = vmatpush1.bf16.msra.mxu0 0
      %883 = vmatprep.subr.bf16.mxu0 0
      %884 = vmatpush1.bf16.msra.mxu0 0
      %885 = vmatprep.subr.bf16.mxu0 0
      %886 = vmatpush1.bf16.msra.mxu0 0
      %887 = vmatprep.subr.bf16.mxu0 0
      %888 = vmatpush1.bf16.msra.mxu0 0
      %889 = vmatprep.mubr.bf16.mxu0 0
      %890 = vmatmul.mubr.bf16.gmra.mrb[0].mxu0 %v849
      %v891 = vpop.f32.mrb[0].mxu0
      %v892 = vadd.f32 0.0, %v891
      %v893 = vpop.f32.mrb[0].mxu0
      %v894 = vadd.f32 0.0, %v893
      %v895 = vpop.f32.mrb[0].mxu0
      %v896 = vpop.f32.mrb[0].mxu0
      %897 = vdwg.mxu0
      %v898 = vadd.f32 %v835, %v892
      %v899 = vadd.f32 %v836, %v894
      %s900 = scalar_lea.vmem %s6, 10
      %v901 = vld [vmem:[%s900] sm:$0x3]
      %902 = vrot.lane.b32.xlu0 %v761, 110
      %v903 = vpop.permute.xlu0 %902
      %904 = vrot.lane.b32.xlu0 %v762, 110
      %v905 = vpop.permute.xlu0 %904
      %906 = vrot.lane.b32.xlu0 %v763, 110
      %v907 = vpop.permute.xlu0 %906
      %vm908 = vcmask 900096
      %v909 = vsel %vm908, %v903, %v905
      %v910 = vsel %vm908, %v905, %v907
      %v912 = vsel %vm344, %v901, 0
      %v915 = vsel %vm348, %v909, 0
      %v918 = vsel %vm348, %v910, 0
      %920 = vmatprep.subr.bf16.mxu0 %v918
      %921 = vmatpush1.bf16.msra.mxu0 %v915
      %922 = vmatprep.subr.bf16.mxu0 0
      %923 = vmatpush1.bf16.msra.mxu0 0
      %924 = vmatprep.subr.bf16.mxu0 0
      %925 = vmatpush1.bf16.msra.mxu0 0
      %926 = vmatprep.subr.bf16.mxu0 0
      %927 = vmatpush1.bf16.msra.mxu0 0
      %928 = vmatprep.subr.bf16.mxu0 0
      %929 = vmatpush1.bf16.msra.mxu0 0
      %930 = vmatprep.subr.bf16.mxu0 0
      %931 = vmatpush1.bf16.msra.mxu0 0
      %932 = vmatprep.subr.bf16.mxu0 0
      %933 = vmatpush1.bf16.msra.mxu0 0
      %934 = vmatprep.subr.bf16.mxu0 0
      %935 = vmatpush1.bf16.msra.mxu0 0
      %936 = vmatprep.subr.bf16.mxu0 0
      %937 = vmatpush1.bf16.msra.mxu0 0
      %938 = vmatprep.subr.bf16.mxu0 0
      %939 = vmatpush1.bf16.msra.mxu0 0
      %940 = vmatprep.subr.bf16.mxu0 0
      %941 = vmatpush1.bf16.msra.mxu0 0
      %942 = vmatprep.subr.bf16.mxu0 0
      %943 = vmatpush1.bf16.msra.mxu0 0
      %944 = vmatprep.subr.bf16.mxu0 0
      %945 = vmatpush1.bf16.msra.mxu0 0
      %946 = vmatprep.subr.bf16.mxu0 0
      %947 = vmatpush1.bf16.msra.mxu0 0
      %948 = vmatprep.subr.bf16.mxu0 0
      %949 = vmatpush1.bf16.msra.mxu0 0
      %950 = vmatprep.subr.bf16.mxu0 0
      %951 = vmatpush1.bf16.msra.mxu0 0
      %952 = vmatprep.mubr.bf16.mxu0 0
      %953 = vmatmul.mubr.bf16.gmra.mrb[0].mxu0 %v912
      %v954 = vpop.f32.mrb[0].mxu0
      %v955 = vadd.f32 0.0, %v954
      %v956 = vpop.f32.mrb[0].mxu0
      %v957 = vadd.f32 0.0, %v956
      %v958 = vpop.f32.mrb[0].mxu0
      %v959 = vpop.f32.mrb[0].mxu0
      %960 = vdwg.mxu0
      %v961 = vld [vmem:[%s730] sm:$0x3]
      %v963 = vlaneseq
      %v964 = vshrl.u32 %v963, 7
      %v965 = vsub.s32 0, %v964
      %v966 = vrot.slane %v961, %v965
      %v967 = vlaneseq
      %v968 = vshrl.u32 %v967, 7
      %v969 = vsub.s32 1, %v968
      %v970 = vrot.slane %v961, %v969
      %v973 = vmul.f32 %v966, %v955
      %v974 = vmul.f32 %v970, %v957
      %v975 = vadd.f32 %v898, %v973
      %v976 = vadd.f32 %v899, %v974
      %v977 = vld [vmem:[#allocation3] sm:$0xff]
      %v980 = vcombine.low %v975, %v976
      %v982 = vadd.f32 %v977, %v980
      %983 = vst [vmem:[#allocation3] sm:$0xff] %v982
      %s984 = scalar_lea.vmem %s6, 12
      %v985 = vld [vmem:[%s984] sm:$0x3]
      %v986 = vld [vmem:[#allocation2] sm:$0xff]
      %v987 = vld [vmem:[#allocation2 + $0x8] sm:$0xf]
      %v990 = vunpack.c.l.b16 %v986
      %v991 = vunpack.c.h.b16 %v986
      %v992 = vunpack.c.l.b16 %v987
      %v993 = vpack.c.b16 %v990, %v990
      %v994 = vpack.c.b16 %v991, %v991
      %v995 = vpack.c.b16 %v992, %v992
      %996 = vrot.lane.b32.xlu0 %v993, 96
      %v997 = vpop.permute.xlu0 %996
      %998 = vrot.lane.b32.xlu0 %v994, 96
      %v999 = vpop.permute.xlu0 %998
      %1000 = vrot.lane.b32.xlu0 %v995, 96
      %v1001 = vpop.permute.xlu0 %1000
      %vm1002 = vcmask 785408
      %v1003 = vsel %vm1002, %v997, %v999
      %v1004 = vsel %vm1002, %v999, %v1001
      %v1006 = vsel %vm344, %v985, 0
      %v1009 = vsel %vm348, %v1003, 0
      %v1012 = vsel %vm348, %v1004, 0
      %1014 = vmatprep.subr.bf16.mxu0 %v1012
      %1015 = vmatpush1.bf16.msra.mxu0 %v1009
      %1016 = vmatprep.subr.bf16.mxu0 0
      %1017 = vmatpush1.bf16.msra.mxu0 0
      %1018 = vmatprep.subr.bf16.mxu0 0
      %1019 = vmatpush1.bf16.msra.mxu0 0
      %1020 = vmatprep.subr.bf16.mxu0 0
      %1021 = vmatpush1.bf16.msra.mxu0 0
      %1022 = vmatprep.subr.bf16.mxu0 0
      %1023 = vmatpush1.bf16.msra.mxu0 0
      %1024 = vmatprep.subr.bf16.mxu0 0
      %1025 = vmatpush1.bf16.msra.mxu0 0
      %1026 = vmatprep.subr.bf16.mxu0 0
      %1027 = vmatpush1.bf16.msra.mxu0 0
      %1028 = vmatprep.subr.bf16.mxu0 0
      %1029 = vmatpush1.bf16.msra.mxu0 0
      %1030 = vmatprep.subr.bf16.mxu0 0
      %1031 = vmatpush1.bf16.msra.mxu0 0
      %1032 = vmatprep.subr.bf16.mxu0 0
      %1033 = vmatpush1.bf16.msra.mxu0 0
      %1034 = vmatprep.subr.bf16.mxu0 0
      %1035 = vmatpush1.bf16.msra.mxu0 0
      %1036 = vmatprep.subr.bf16.mxu0 0
      %1037 = vmatpush1.bf16.msra.mxu0 0
      %1038 = vmatprep.subr.bf16.mxu0 0
      %1039 = vmatpush1.bf16.msra.mxu0 0
      %1040 = vmatprep.subr.bf16.mxu0 0
      %1041 = vmatpush1.bf16.msra.mxu0 0
      %1042 = vmatprep.subr.bf16.mxu0 0
      %1043 = vmatpush1.bf16.msra.mxu0 0
      %1044 = vmatprep.subr.bf16.mxu0 0
      %1045 = vmatpush1.bf16.msra.mxu0 0
      %1046 = vmatprep.mubr.bf16.mxu0 0
      %1047 = vmatmul.mubr.bf16.gmra.mrb[0].mxu0 %v1006
      %v1048 = vpop.f32.mrb[0].mxu0
      %v1049 = vadd.f32 0.0, %v1048
      %v1050 = vpop.f32.mrb[0].mxu0
      %v1051 = vadd.f32 0.0, %v1050
      %v1052 = vpop.f32.mrb[0].mxu0
      %v1053 = vpop.f32.mrb[0].mxu0
      %1054 = vdwg.mxu0
      %v1055 = vld [vmem:[%s3] sm:$0x3]
      %v1057 = vlaneseq
      %v1058 = vshrl.u32 %v1057, 7
      %v1059 = vsub.s32 0, %v1058
      %v1060 = vrot.slane %v1055, %v1059
      %v1061 = vlaneseq
      %v1062 = vshrl.u32 %v1061, 7
      %v1063 = vsub.s32 1, %v1062
      %v1064 = vrot.slane %v1055, %v1063
      %v1067 = vmul.f32 %v1060, %v1049
      %v1068 = vmul.f32 %v1064, %v1051
      %s1069 = scalar_lea.vmem %s6, 14
      %v1070 = vld [vmem:[%s1069] sm:$0x3]
      %1071 = vrot.lane.b32.xlu0 %v993, 95
      %v1072 = vpop.permute.xlu0 %1071
      %1073 = vrot.lane.b32.xlu0 %v994, 95
      %v1074 = vpop.permute.xlu0 %1073
      %1075 = vrot.lane.b32.xlu0 %v995, 95
      %v1076 = vpop.permute.xlu0 %1075
      %vm1077 = vcmask 777216
      %v1078 = vsel %vm1077, %v1072, %v1074
      %v1079 = vsel %vm1077, %v1074, %v1076
      %v1081 = vsel %vm344, %v1070, 0
      %v1084 = vsel %vm348, %v1078, 0
      %v1087 = vsel %vm348, %v1079, 0
      %1089 = vmatprep.subr.bf16.mxu0 %v1087
      %1090 = vmatpush1.bf16.msra.mxu0 %v1084
      %1091 = vmatprep.subr.bf16.mxu0 0
      %1092 = vmatpush1.bf16.msra.mxu0 0
      %1093 = vmatprep.subr.bf16.mxu0 0
      %1094 = vmatpush1.bf16.msra.mxu0 0
      %1095 = vmatprep.subr.bf16.mxu0 0
      %1096 = vmatpush1.bf16.msra.mxu0 0
      %1097 = vmatprep.subr.bf16.mxu0 0
      %1098 = vmatpush1.bf16.msra.mxu0 0
      %1099 = vmatprep.subr.bf16.mxu0 0
      %1100 = vmatpush1.bf16.msra.mxu0 0
      %1101 = vmatprep.subr.bf16.mxu0 0
      %1102 = vmatpush1.bf16.msra.mxu0 0
      %1103 = vmatprep.subr.bf16.mxu0 0
      %1104 = vmatpush1.bf16.msra.mxu0 0
      %1105 = vmatprep.subr.bf16.mxu0 0
      %1106 = vmatpush1.bf16.msra.mxu0 0
      %1107 = vmatprep.subr.bf16.mxu0 0
      %1108 = vmatpush1.bf16.msra.mxu0 0
      %1109 = vmatprep.subr.bf16.mxu0 0
      %1110 = vmatpush1.bf16.msra.mxu0 0
      %1111 = vmatprep.subr.bf16.mxu0 0
      %1112 = vmatpush1.bf16.msra.mxu0 0
      %1113 = vmatprep.subr.bf16.mxu0 0
      %1114 = vmatpush1.bf16.msra.mxu0 0
      %1115 = vmatprep.subr.bf16.mxu0 0
      %1116 = vmatpush1.bf16.msra.mxu0 0
      %1117 = vmatprep.subr.bf16.mxu0 0
      %1118 = vmatpush1.bf16.msra.mxu0 0
      %1119 = vmatprep.subr.bf16.mxu0 0
      %1120 = vmatpush1.bf16.msra.mxu0 0
      %1121 = vmatprep.mubr.bf16.mxu0 0
      %1122 = vmatmul.mubr.bf16.gmra.mrb[0].mxu0 %v1081
      %v1123 = vpop.f32.mrb[0].mxu0
      %v1124 = vadd.f32 0.0, %v1123
      %v1125 = vpop.f32.mrb[0].mxu0
      %v1126 = vadd.f32 0.0, %v1125
      %v1127 = vpop.f32.mrb[0].mxu0
      %v1128 = vpop.f32.mrb[0].mxu0
      %1129 = vdwg.mxu0
      %v1130 = vadd.f32 %v1067, %v1124
      %v1131 = vadd.f32 %v1068, %v1126
      %s1132 = scalar_lea.vmem %s6, 16
      %v1133 = vld [vmem:[%s1132] sm:$0x3]
      %1134 = vrot.lane.b32.xlu0 %v993, 94
      %v1135 = vpop.permute.xlu0 %1134
      %1136 = vrot.lane.b32.xlu0 %v994, 94
      %v1137 = vpop.permute.xlu0 %1136
      %1138 = vrot.lane.b32.xlu0 %v995, 94
      %v1139 = vpop.permute.xlu0 %1138
      %vm1140 = vcmask 769024
      %v1141 = vsel %vm1140, %v1135, %v1137
      %v1142 = vsel %vm1140, %v1137, %v1139
      %v1144 = vsel %vm344, %v1133, 0
      %v1147 = vsel %vm348, %v1141, 0
      %v1150 = vsel %vm348, %v1142, 0
      %1152 = vmatprep.subr.bf16.mxu0 %v1150
      %1153 = vmatpush1.bf16.msra.mxu0 %v1147
      %1154 = vmatprep.subr.bf16.mxu0 0
      %1155 = vmatpush1.bf16.msra.mxu0 0
      %1156 = vmatprep.subr.bf16.mxu0 0
      %1157 = vmatpush1.bf16.msra.mxu0 0
      %1158 = vmatprep.subr.bf16.mxu0 0
      %1159 = vmatpush1.bf16.msra.mxu0 0
      %1160 = vmatprep.subr.bf16.mxu0 0
      %1161 = vmatpush1.bf16.msra.mxu0 0
      %1162 = vmatprep.subr.bf16.mxu0 0
      %1163 = vmatpush1.bf16.msra.mxu0 0
      %1164 = vmatprep.subr.bf16.mxu0 0
      %1165 = vmatpush1.bf16.msra.mxu0 0
      %1166 = vmatprep.subr.bf16.mxu0 0
      %1167 = vmatpush1.bf16.msra.mxu0 0
      %1168 = vmatprep.subr.bf16.mxu0 0
      %1169 = vmatpush1.bf16.msra.mxu0 0
      %1170 = vmatprep.subr.bf16.mxu0 0
      %1171 = vmatpush1.bf16.msra.mxu0 0
      %1172 = vmatprep.subr.bf16.mxu0 0
      %1173 = vmatpush1.bf16.msra.mxu0 0
      %1174 = vmatprep.subr.bf16.mxu0 0
      %1175 = vmatpush1.bf16.msra.mxu0 0
      %1176 = vmatprep.subr.bf16.mxu0 0
      %1177 = vmatpush1.bf16.msra.mxu0 0
      %1178 = vmatprep.subr.bf16.mxu0 0
      %1179 = vmatpush1.bf16.msra.mxu0 0
      %1180 = vmatprep.subr.bf16.mxu0 0
      %1181 = vmatpush1.bf16.msra.mxu0 0
      %1182 = vmatprep.subr.bf16.mxu0 0
      %1183 = vmatpush1.bf16.msra.mxu0 0
      %1184 = vmatprep.mubr.bf16.mxu0 0
      %1185 = vmatmul.mubr.bf16.gmra.mrb[0].mxu0 %v1144
      %v1186 = vpop.f32.mrb[0].mxu0
      %v1187 = vadd.f32 0.0, %v1186
      %v1188 = vpop.f32.mrb[0].mxu0
      %v1189 = vadd.f32 0.0, %v1188
      %v1190 = vpop.f32.mrb[0].mxu0
      %v1191 = vpop.f32.mrb[0].mxu0
      %1192 = vdwg.mxu0
      %v1193 = vld [vmem:[%s730] sm:$0x3]
      %v1195 = vlaneseq
      %v1196 = vshrl.u32 %v1195, 7
      %v1197 = vsub.s32 0, %v1196
      %v1198 = vrot.slane %v1193, %v1197
      %v1199 = vlaneseq
      %v1200 = vshrl.u32 %v1199, 7
      %v1201 = vsub.s32 1, %v1200
      %v1202 = vrot.slane %v1193, %v1201
      %v1205 = vmul.f32 %v1198, %v1187
      %v1206 = vmul.f32 %v1202, %v1189
      %v1207 = vadd.f32 %v1130, %v1205
      %v1208 = vadd.f32 %v1131, %v1206
      %v1209 = vld [vmem:[#allocation3] sm:$0xff]
      %v1212 = vcombine.low %v1207, %v1208
      %v1214 = vadd.f32 %v1209, %v1212
      %1215 = vst [vmem:[#allocation3] sm:$0xff] %v1214
      %v1216 = vld [vmem:[#allocation3] sm:$0xff]
      %v1217 = vld [vmem:[%s7] sm:$0xf]
      %1219 = vset.pattern.permute.xlu0 0
      %1220 = vperm.xlu0 %1219, %v1217
      %v1221 = vpop.permute.xlu0 %1220
      %v1223 = vunpack.c.l.s4 839922192
      %v1224 = vunpack.c.0.s8 %v1223
      %v1225 = vlaneseq
      %v1226 = vshrl.u32 %v1225, 7
      %v1227 = vsub.s32 %v1224, %v1226
      %v1228 = vrot.slane %v1221, %v1227
      %v1230 = vadd.f32 %v1216, %v1228
      %v1231 = vmax.f32 %v1230, 0.0
      %1232 = vst [vmem:[%s325] sm:$0xff] %v1231
      %p1233 = scmp.lt.s32.totalorder %s19, 1
      %s1234 = scalar_select %p1233, %s19, 1
      %s1235 = smul.addr %s1234, 2
      %s1236 = smul.addr %s1235, 4
      %s1237 = scalar_lea.vmem %s8, %s1236
      // Predicated region
      $region53: #{decoder_forward.1} parent=51 // pred_check
        %p1238 = pneg %p215
      $region54: #{decoder_forward.1} parent=51 // pred_check_branch
        %1240 = sbr.rel (%p1238) target = $region56
      $region55: #{decoder_forward.1} parent=51 // pred_region
        _
      $region56: #{decoder_forward.1} parent=51 // pred_fallthru
        _
    $region52: #{decoder_forward.1} parent=5 // pred_fallthru
      _
    %p1241 = scmp.le.s32.totalorder 2, %s14
    // Predicated region
    $region57: #{decoder_forward.1} parent=5 // pred_check
      %p1242 = pneg %p1241
    $region58: #{decoder_forward.1} parent=5 // pred_check_branch
      %1244 = sbr.rel (%p1242) target = $region60
    $region59: #{decoder_forward.1} parent=5 // pred_region
      %s1245 = ssub.s32 %s14, 2
      // Predicated region
      $region61: #{decoder_forward.1} parent=59 // pred_check
        %p1246 = pneg %p221
      $region62: #{decoder_forward.1} parent=59 // pred_check_branch
        %1248 = sbr.rel (%p1246) target = $region64
      $region63: #{decoder_forward.1} parent=59 // pred_region
        %p1249 = scmp.lt.s32.totalorder %s20, 1
        %s1250 = scalar_select %p1249, %s20, 1
        %s1251 = smul.addr %s1250, 2
        %s1252 = smul.addr %s1251, 4
        %s1253 = scalar_lea.vmem %s8, %s1252
      $region64: #{decoder_forward.1} parent=59 // pred_fallthru
        _
    $region60: #{decoder_forward.1} parent=5 // pred_fallthru
      _
  $region6: #{decoder_forward.1} parent=0 // loop_footer
    %s18 = sadd.s32 1, %s14
  $region7: #{decoder_forward.1} parent=0 // loop_footer_branch
    %13 = sbr.rel target = $region3
  $region8: #{decoder_forward.1} parent=0 // loop_exit
    _

</llo_original>
